<compile_context>
chip_gen: v7x
topology: tpu7x:2x2x1
jax: 0.10.0
libtpu: 0.0.40
codegen_flags: <defaults>
</compile_context>

<pallas_src>
import functools

import jax
import jax.numpy as jnp
from jax.experimental import pallas as pl
from jax.experimental.pallas import tpu as pltpu


# ------------------------------ fused kernel ---------------------------------
def _make_fused_kernel(num_layers, seq_len, b_pad, hidden, vocab_pad):
    four_h = 4 * hidden
    rows = seq_len * b_pad

    def kernel(*refs):
        ids_ref, len_ref, emb_ref = refs[0], refs[1], refs[2]
        layer_refs = refs[3:3 + 3 * num_layers]
        wout_ref = refs[3 + 3 * num_layers]
        bout_ref = refs[4 + 3 * num_layers]
        out_ref = refs[5 + 3 * num_layers]
        gx_scr = refs[6 + 3 * num_layers]      # (T*B_pad, 4H) f32
        hseq_scr = refs[7 + 3 * num_layers]    # (T*B_pad, H)  f32

        # ---- Embedding lookup fused in-kernel (gather-as-matmul) ----
        vocab_iota = jax.lax.broadcasted_iota(jnp.int32, (rows, vocab_pad), 1)
        one_hot = (vocab_iota == ids_ref[...]).astype(jnp.bfloat16)
        layer_in = jnp.dot(one_hot, emb_ref[...],
                           preferred_element_type=jnp.float32
                           ).astype(jnp.bfloat16)            # (T*B, D_in) bf16

        # ---- hoisted loop invariants (JAX does not CSE broadcasts) ----
        lens_b = jnp.broadcast_to(len_ref[...], (b_pad, hidden))   # (B, H) i32
        gate_lane = jax.lax.broadcasted_iota(jnp.int32, (b_pad, four_h), 1)
        g_slot = (gate_lane >= 2 * hidden) & (gate_lane < 3 * hidden)

        h_last = jnp.zeros((b_pad, hidden), jnp.float32)

        for layer in range(num_layers):
            wih_ref, whh_ref, b_ref = layer_refs[3 * layer: 3 * layer + 3]
            last_layer = layer == num_layers - 1

            # Hoisted input projection: one batched matmul over all timesteps.
            gx_scr[...] = (
                jnp.dot(layer_in, wih_ref[...],
                        preferred_element_type=jnp.float32)
                + b_ref[...])                                 # (T*B, 4H) f32

            # Load recurrent weights ONCE per layer (not per unrolled step).
            whh = whh_ref[...]                                # (H, 4H) bf16

            h = jnp.zeros((b_pad, hidden), jnp.float32)
            c = jnp.zeros((b_pad, hidden), jnp.float32)
            for t in range(seq_len):                          # fully unrolled
                gates = gx_scr[t * b_pad:(t + 1) * b_pad, :] + jnp.dot(
                    h.astype(jnp.bfloat16), whh,
                    preferred_element_type=jnp.float32)       # (B, 4H) f32
                # Combined activation on the packed gate vreg:
                # sigmoid everywhere, tanh only on the g slot (PyTorch i,f,g,o).
                acts = jnp.where(g_slot, jnp.tanh(gates), jax.nn.sigmoid(gates))
                i_g = acts[:, 0 * hidden:1 * hidden]
                f_g = acts[:, 1 * hidden:2 * hidden]
                g_g = acts[:, 2 * hidden:3 * hidden]
                o_g = acts[:, 3 * hidden:4 * hidden]
                c = f_g * c + i_g * g_g
                h = o_g * jnp.tanh(c)
                if last_layer:
                    # _fetch: keep h at step t == sen_length - 1 per batch row.
                    h_last = jnp.where(lens_b == t + 1, h, h_last)
                else:
                    hseq_scr[t * b_pad:(t + 1) * b_pad, :] = h
            if not last_layer:
                layer_in = hseq_scr[...].astype(jnp.bfloat16)
                # TODO(synk): inter-layer dropout (p=0.5) omitted — inference.

        # Classifier + softmax (tiny, kept f32).
        logits = (jnp.dot(h_last, wout_ref[...],
                          preferred_element_type=jnp.float32)
                  + bout_ref[...])                            # (B_pad, O)
        m = jnp.max(logits, axis=-1, keepdims=True)
        e = jnp.exp(logits - m)
        out_ref[...] = e / jnp.sum(e, axis=-1, keepdims=True)

    return kernel


def fused_lstm_forward(ids_col, lens_col, emb, layer_params, w_out_t,
                       b_out_row, *, num_layers, seq_len, b_pad, hidden):
    out_dim = w_out_t.shape[1]
    vocab_pad = emb.shape[0]
    flat = []
    for (wih, whh, b) in layer_params:
        flat += [wih, whh, b]
    kernel = _make_fused_kernel(num_layers, seq_len, b_pad, hidden, vocab_pad)
    vmem = pl.BlockSpec(memory_space=pltpu.MemorySpace.VMEM)
    n_in = 3 + len(flat) + 2
    return pl.pallas_call(
        kernel,
        out_shape=jax.ShapeDtypeStruct((b_pad, out_dim), jnp.float32),
        in_specs=[vmem] * n_in,
        out_specs=vmem,
        scratch_shapes=[
            pltpu.VMEM((seq_len * b_pad, 4 * hidden), jnp.float32),  # gates_x
            pltpu.VMEM((seq_len * b_pad, hidden), jnp.float32),      # layer out
        ],
    )(ids_col, lens_col, emb, *flat, w_out_t, b_out_row)


# ----------------------- parameter packing / layout ---------------------------
def pack_lstm_layer_params(w_ih, w_hh, b_ih, b_hh):
    """PyTorch-layout (4H, D_in)/(4H, H)/(4H,) -> kernel-ready transposed bf16
    weights with gates packed at their TRUE width (4H == 128 lanes for H=32),
    and a combined f32 bias row."""
    return (jnp.asarray(w_ih).T.astype(jnp.bfloat16),        # (D_in, 4H)
            jnp.asarray(w_hh).T.astype(jnp.bfloat16),        # (H,    4H)
            (jnp.asarray(b_ih) + jnp.asarray(b_hh))[None, :].astype(jnp.float32))


def pack_output_params(w_out, b_out):
    """(O, H)/(O,) -> (H, O) f32 and (1, O) f32."""
    return jnp.asarray(w_out).T.astype(jnp.float32), jnp.asarray(b_out)[None, :].astype(jnp.float32)


def pad_embedding(embeddings, vocab_pad):
    """(V, D) f32 -> (vocab_pad, D) bf16 (extra rows zero; ids never hit them)."""
    vocab, d = embeddings.shape
    emb_p = jnp.zeros((vocab_pad, d), jnp.float32).at[:vocab].set(embeddings)
    return emb_p.astype(jnp.bfloat16)


# --------------------------------- forward ------------------------------------
@functools.partial(jax.jit, static_argnames=("num_layers", "hidden", "b_pad"))
def forward(sen_batch, sen_lengths, emb_bf16, layer_params, w_out_t,
            b_out_row, *, num_layers, hidden, b_pad):
    """Embedding -> stacked LSTM -> last-valid hidden -> Linear -> softmax.
    Only cheap integer id shuffling happens outside the kernel; the embedding
    gather itself is fused into the kernel as a one-hot matmul."""
    batch, seq_len = sen_batch.shape
    ids = jnp.transpose(sen_batch.astype(jnp.int32))                 # (T, B)
    ids = jnp.pad(ids, ((0, 0), (0, b_pad - batch)))                 # (T, B_pad)
    ids_col = ids.reshape(seq_len * b_pad, 1)                        # (T*B_pad,1)
    lens_col = jnp.pad(sen_lengths.astype(jnp.int32), (0, b_pad - batch),
                       constant_values=1)[:, None]                   # (B_pad, 1)
    out = fused_lstm_forward(ids_col, lens_col, emb_bf16, layer_params,
                             w_out_t, b_out_row, num_layers=num_layers,
                             seq_len=seq_len, b_pad=b_pad, hidden=hidden)
    return out[:batch]


# ----------------------------------- main --------------------------------------
if __name__ == "__main__":
    vocab = 50
    input_dim = 16      # embedding dim == LSTM input dim (module requires this)
    hidden_dim = 32     # 4 * hidden == 128 -> gates pack into one lane tile
    num_layers = 2
    output_dim = 3
    max_len = 8         # sequence length
    batch = 2

    B_PAD = 8                                   # full sublane group
    VOCAB_PAD = ((vocab + 15) // 16) * 16       # 64, nice bf16 contraction dim

    key = jax.random.PRNGKey(0)
    keys = jax.random.split(key, 16)

    embeddings = jax.random.normal(keys[0], (vocab, input_dim), jnp.float32)
    emb_bf16 = pad_embedding(embeddings, VOCAB_PAD)

    k = 1.0 / jnp.sqrt(jnp.float32(hidden_dim))
    layer_params = []
    ki = 1
    for layer in range(num_layers):
        d_in = input_dim if layer == 0 else hidden_dim
        w_ih = jax.random.uniform(keys[ki], (4 * hidden_dim, d_in),
                                  jnp.float32, -k, k); ki += 1
        w_hh = jax.random.uniform(keys[ki], (4 * hidden_dim, hidden_dim),
                                  jnp.float32, -k, k); ki += 1
        b_ih = jax.random.uniform(keys[ki], (4 * hidden_dim,),
                                  jnp.float32, -k, k); ki += 1
        b_hh = jax.random.uniform(keys[ki], (4 * hidden_dim,),
                                  jnp.float32, -k, k); ki += 1
        layer_params.append(pack_lstm_layer_params(w_ih, w_hh, b_ih, b_hh))

    w_out = jax.random.uniform(keys[ki], (output_dim, hidden_dim),
                               jnp.float32, -k, k); ki += 1
    b_out = jax.random.uniform(keys[ki], (output_dim,),
                               jnp.float32, -k, k); ki += 1
    w_out_t, b_out_row = pack_output_params(w_out, b_out)

    sen_batch = jax.random.randint(keys[ki], (batch, max_len), 0, vocab,
                                   dtype=jnp.int32); ki += 1
    sen_lengths = jnp.array([5, 8], dtype=jnp.int32)   # true lengths <= max_len

    out_prob = forward(sen_batch, sen_lengths, emb_bf16, layer_params,
                       w_out_t, b_out_row,
                       num_layers=num_layers, hidden=hidden_dim, b_pad=B_PAD)
    out_prob = jax.block_until_ready(out_prob)

    assert out_prob.shape == (batch, output_dim)
    assert bool(jnp.all(jnp.isfinite(out_prob)))
    assert bool(jnp.allclose(jnp.sum(out_prob, axis=-1), 1.0, atol=1e-5))
    print("KERNEL_OK")
</pallas_src>

<mosaic_0001>
module attributes {stable_mosaic.version = 11 : i64} {
  func.func @kernel(%arg0: memref<64x1xi32, #tpu.memory_space<vmem>>, %arg1: memref<8x1xi32, #tpu.memory_space<vmem>>, %arg2: memref<64x16xbf16, #tpu.memory_space<vmem>>, %arg3: memref<16x128xbf16, #tpu.memory_space<vmem>>, %arg4: memref<32x128xbf16, #tpu.memory_space<vmem>>, %arg5: memref<1x128xf32, #tpu.memory_space<vmem>>, %arg6: memref<32x128xbf16, #tpu.memory_space<vmem>>, %arg7: memref<32x128xbf16, #tpu.memory_space<vmem>>, %arg8: memref<1x128xf32, #tpu.memory_space<vmem>>, %arg9: memref<32x3xf32, #tpu.memory_space<vmem>>, %arg10: memref<1x3xf32, #tpu.memory_space<vmem>>, %arg11: memref<8x3xf32, #tpu.memory_space<vmem>>, %arg12: memref<64x128xf32, #tpu.memory_space<vmem>>, %arg13: memref<64x32xf32, #tpu.memory_space<vmem>>) attributes {dimension_semantics = [], scalar_prefetch = 0 : i64, scratch_operands = 2 : i64, tpu.core_type = #tpu.core_type<tc>} {
    %0 = tpu.iota {dimensions = array<i32: 1>} : vector<64x64xi32>
    %c0 = arith.constant 0 : index
    %c0_0 = arith.constant 0 : index
    %1 = vector.load %arg0[%c0, %c0_0] : memref<64x1xi32, #tpu.memory_space<vmem>>, vector<64x1xi32>
    %2 = vector.broadcast %1 : vector<64x1xi32> to vector<64x64xi32>
    %3 = arith.cmpi eq, %0, %2 : vector<64x64xi32>
    %4 = arith.extui %3 : vector<64x64xi1> to vector<64x64xi32>
    %5 = arith.sitofp %4 : vector<64x64xi32> to vector<64x64xf32>
    %6 = arith.truncf %5 : vector<64x64xf32> to vector<64x64xbf16>
    %c0_1 = arith.constant 0 : index
    %c0_2 = arith.constant 0 : index
    %7 = vector.load %arg2[%c0_1, %c0_2] : memref<64x16xbf16, #tpu.memory_space<vmem>>, vector<64x16xbf16>
    %cst = arith.constant dense<0.000000e+00> : vector<64x16xf32>
    %8 = tpu.matmul %6, %7, %cst {dimension_numbers = #tpu.dot_dimension_numbers<[1], [0], [0], [1], [0, 0, 1, 1], [], []>} : vector<64x64xbf16>, vector<64x16xbf16>, vector<64x16xf32> -> vector<64x16xf32>
    %9 = arith.truncf %8 : vector<64x16xf32> to vector<64x16xbf16>
    %c0_3 = arith.constant 0 : index
    %c0_4 = arith.constant 0 : index
    %10 = vector.load %arg1[%c0_3, %c0_4] : memref<8x1xi32, #tpu.memory_space<vmem>>, vector<8x1xi32>
    %11 = vector.shape_cast %10 : vector<8x1xi32> to vector<8x1xi32>
    %12 = vector.broadcast %11 : vector<8x1xi32> to vector<8x32xi32>
    %13 = tpu.iota {dimensions = array<i32: 1>} : vector<8x128xi32>
    %c64_i32 = arith.constant 64 : i32
    %14 = vector.broadcast %c64_i32 : i32 to vector<8x128xi32>
    %15 = arith.cmpi sge, %13, %14 : vector<8x128xi32>
    %c96_i32 = arith.constant 96 : i32
    %16 = vector.broadcast %c96_i32 : i32 to vector<8x128xi32>
    %17 = arith.cmpi slt, %13, %16 : vector<8x128xi32>
    %18 = arith.andi %15, %17 : vector<8x128xi1>
    %cst_5 = arith.constant 0.000000e+00 : f32
    %19 = vector.broadcast %cst_5 : f32 to vector<8x32xf32>
    %c0_6 = arith.constant 0 : index
    %c0_7 = arith.constant 0 : index
    %20 = vector.load %arg3[%c0_6, %c0_7] : memref<16x128xbf16, #tpu.memory_space<vmem>>, vector<16x128xbf16>
    %cst_8 = arith.constant dense<0.000000e+00> : vector<64x128xf32>
    %21 = tpu.matmul %9, %20, %cst_8 {dimension_numbers = #tpu.dot_dimension_numbers<[1], [0], [0], [1], [0, 0, 1, 1], [], []>} : vector<64x16xbf16>, vector<16x128xbf16>, vector<64x128xf32> -> vector<64x128xf32>
    %c0_9 = arith.constant 0 : index
    %c0_10 = arith.constant 0 : index
    %22 = vector.load %arg5[%c0_9, %c0_10] : memref<1x128xf32, #tpu.memory_space<vmem>>, vector<1x128xf32>
    %23 = vector.broadcast %22 : vector<1x128xf32> to vector<64x128xf32>
    %24 = arith.addf %21, %23 : vector<64x128xf32>
    %c0_11 = arith.constant 0 : index
    %c0_12 = arith.constant 0 : index
    %25 = vector.load %arg12[%c0_11, %c0_12] : memref<64x128xf32, #tpu.memory_space<vmem>>, vector<64x128xf32>
    tpu.vector_store %arg12[%c0_11, %c0_12], %24 {strides = array<i32>} : memref<64x128xf32, #tpu.memory_space<vmem>>, vector<64x128xf32>,
    %c0_13 = arith.constant 0 : index
    %c0_14 = arith.constant 0 : index
    %26 = vector.load %arg4[%c0_13, %c0_14] : memref<32x128xbf16, #tpu.memory_space<vmem>>, vector<32x128xbf16>
    %cst_15 = arith.constant 0.000000e+00 : f32
    %27 = vector.broadcast %cst_15 : f32 to vector<8x32xf32>
    %cst_16 = arith.constant 0.000000e+00 : f32
    %28 = vector.broadcast %cst_16 : f32 to vector<8x32xf32>
    %c0_17 = arith.constant 0 : index
    %c0_18 = arith.constant 0 : index
    %29 = vector.load %arg12[%c0_17, %c0_18] : memref<64x128xf32, #tpu.memory_space<vmem>>, vector<8x128xf32>
    %30 = arith.truncf %27 : vector<8x32xf32> to vector<8x32xbf16>
    %cst_19 = arith.constant dense<0.000000e+00> : vector<8x128xf32>
    %31 = tpu.matmul %30, %26, %cst_19 {dimension_numbers = #tpu.dot_dimension_numbers<[1], [0], [0], [1], [0, 0, 1, 1], [], []>} : vector<8x32xbf16>, vector<32x128xbf16>, vector<8x128xf32> -> vector<8x128xf32>
    %32 = arith.addf %29, %31 : vector<8x128xf32>
    %33 = math.tanh %32 : vector<8x128xf32>
    %34 = arith.negf %32 : vector<8x128xf32>
    %35 = math.exp %34 : vector<8x128xf32>
    %cst_20 = arith.constant 1.000000e+00 : f32
    %36 = vector.broadcast %cst_20 : f32 to vector<8x128xf32>
    %37 = arith.addf %36, %35 : vector<8x128xf32>
    %38 = arith.divf %36, %37 : vector<8x128xf32>
    %39 = arith.select %18, %33, %38 : vector<8x128xi1>, vector<8x128xf32>
    %40 = vector.extract_strided_slice %39 {offsets = [0, 0], sizes = [8, 32], strides = [1, 1]} : vector<8x128xf32> to vector<8x32xf32>
    %41 = vector.extract_strided_slice %39 {offsets = [0, 32], sizes = [8, 32], strides = [1, 1]} : vector<8x128xf32> to vector<8x32xf32>
    %42 = vector.extract_strided_slice %39 {offsets = [0, 64], sizes = [8, 32], strides = [1, 1]} : vector<8x128xf32> to vector<8x32xf32>
    %43 = vector.extract_strided_slice %39 {offsets = [0, 96], sizes = [8, 32], strides = [1, 1]} : vector<8x128xf32> to vector<8x32xf32>
    %44 = arith.mulf %41, %28 : vector<8x32xf32>
    %45 = arith.mulf %40, %42 : vector<8x32xf32>
    %46 = arith.addf %44, %45 : vector<8x32xf32>
    %47 = math.tanh %46 : vector<8x32xf32>
    %48 = arith.mulf %43, %47 : vector<8x32xf32>
    %c0_21 = arith.constant 0 : index
    %c0_22 = arith.constant 0 : index
    %49 = vector.load %arg13[%c0_21, %c0_22] : memref<64x32xf32, #tpu.memory_space<vmem>>, vector<8x32xf32>
    tpu.vector_store %arg13[%c0_21, %c0_22], %48 {strides = array<i32>} : memref<64x32xf32, #tpu.memory_space<vmem>>, vector<8x32xf32>,
    %c8 = arith.constant 8 : index
    %c0_23 = arith.constant 0 : index
    %50 = vector.load %arg12[%c8, %c0_23] : memref<64x128xf32, #tpu.memory_space<vmem>>, vector<8x128xf32>
    %51 = arith.truncf %48 : vector<8x32xf32> to vector<8x32xbf16>
    %cst_24 = arith.constant dense<0.000000e+00> : vector<8x128xf32>
    %52 = tpu.matmul %51, %26, %cst_24 {dimension_numbers = #tpu.dot_dimension_numbers<[1], [0], [0], [1], [0, 0, 1, 1], [], []>} : vector<8x32xbf16>, vector<32x128xbf16>, vector<8x128xf32> -> vector<8x128xf32>
    %53 = arith.addf %50, %52 : vector<8x128xf32>
    %54 = math.tanh %53 : vector<8x128xf32>
    %55 = arith.negf %53 : vector<8x128xf32>
    %56 = math.exp %55 : vector<8x128xf32>
    %cst_25 = arith.constant 1.000000e+00 : f32
    %57 = vector.broadcast %cst_25 : f32 to vector<8x128xf32>
    %58 = arith.addf %57, %56 : vector<8x128xf32>
    %59 = arith.divf %57, %58 : vector<8x128xf32>
    %60 = arith.select %18, %54, %59 : vector<8x128xi1>, vector<8x128xf32>
    %61 = vector.extract_strided_slice %60 {offsets = [0, 0], sizes = [8, 32], strides = [1, 1]} : vector<8x128xf32> to vector<8x32xf32>
    %62 = vector.extract_strided_slice %60 {offsets = [0, 32], sizes = [8, 32], strides = [1, 1]} : vector<8x128xf32> to vector<8x32xf32>
    %63 = vector.extract_strided_slice %60 {offsets = [0, 64], sizes = [8, 32], strides = [1, 1]} : vector<8x128xf32> to vector<8x32xf32>
    %64 = vector.extract_strided_slice %60 {offsets = [0, 96], sizes = [8, 32], strides = [1, 1]} : vector<8x128xf32> to vector<8x32xf32>
    %65 = arith.mulf %62, %46 : vector<8x32xf32>
    %66 = arith.mulf %61, %63 : vector<8x32xf32>
    %67 = arith.addf %65, %66 : vector<8x32xf32>
    %68 = math.tanh %67 : vector<8x32xf32>
    %69 = arith.mulf %64, %68 : vector<8x32xf32>
    %c8_26 = arith.constant 8 : index
    %c0_27 = arith.constant 0 : index
    %70 = vector.load %arg13[%c8_26, %c0_27] : memref<64x32xf32, #tpu.memory_space<vmem>>, vector<8x32xf32>
    tpu.vector_store %arg13[%c8_26, %c0_27], %69 {strides = array<i32>} : memref<64x32xf32, #tpu.memory_space<vmem>>, vector<8x32xf32>,
    %c16 = arith.constant 16 : index
    %c0_28 = arith.constant 0 : index
    %71 = vector.load %arg12[%c16, %c0_28] : memref<64x128xf32, #tpu.memory_space<vmem>>, vector<8x128xf32>
    %72 = arith.truncf %69 : vector<8x32xf32> to vector<8x32xbf16>
    %cst_29 = arith.constant dense<0.000000e+00> : vector<8x128xf32>
    %73 = tpu.matmul %72, %26, %cst_29 {dimension_numbers = #tpu.dot_dimension_numbers<[1], [0], [0], [1], [0, 0, 1, 1], [], []>} : vector<8x32xbf16>, vector<32x128xbf16>, vector<8x128xf32> -> vector<8x128xf32>
    %74 = arith.addf %71, %73 : vector<8x128xf32>
    %75 = math.tanh %74 : vector<8x128xf32>
    %76 = arith.negf %74 : vector<8x128xf32>
    %77 = math.exp %76 : vector<8x128xf32>
    %cst_30 = arith.constant 1.000000e+00 : f32
    %78 = vector.broadcast %cst_30 : f32 to vector<8x128xf32>
    %79 = arith.addf %78, %77 : vector<8x128xf32>
    %80 = arith.divf %78, %79 : vector<8x128xf32>
    %81 = arith.select %18, %75, %80 : vector<8x128xi1>, vector<8x128xf32>
    %82 = vector.extract_strided_slice %81 {offsets = [0, 0], sizes = [8, 32], strides = [1, 1]} : vector<8x128xf32> to vector<8x32xf32>
    %83 = vector.extract_strided_slice %81 {offsets = [0, 32], sizes = [8, 32], strides = [1, 1]} : vector<8x128xf32> to vector<8x32xf32>
    %84 = vector.extract_strided_slice %81 {offsets = [0, 64], sizes = [8, 32], strides = [1, 1]} : vector<8x128xf32> to vector<8x32xf32>
    %85 = vector.extract_strided_slice %81 {offsets = [0, 96], sizes = [8, 32], strides = [1, 1]} : vector<8x128xf32> to vector<8x32xf32>
    %86 = arith.mulf %83, %67 : vector<8x32xf32>
    %87 = arith.mulf %82, %84 : vector<8x32xf32>
    %88 = arith.addf %86, %87 : vector<8x32xf32>
    %89 = math.tanh %88 : vector<8x32xf32>
    %90 = arith.mulf %85, %89 : vector<8x32xf32>
    %c16_31 = arith.constant 16 : index
    %c0_32 = arith.constant 0 : index
    %91 = vector.load %arg13[%c16_31, %c0_32] : memref<64x32xf32, #tpu.memory_space<vmem>>, vector<8x32xf32>
    tpu.vector_store %arg13[%c16_31, %c0_32], %90 {strides = array<i32>} : memref<64x32xf32, #tpu.memory_space<vmem>>, vector<8x32xf32>,
    %c24 = arith.constant 24 : index
    %c0_33 = arith.constant 0 : index
    %92 = vector.load %arg12[%c24, %c0_33] : memref<64x128xf32, #tpu.memory_space<vmem>>, vector<8x128xf32>
    %93 = arith.truncf %90 : vector<8x32xf32> to vector<8x32xbf16>
    %cst_34 = arith.constant dense<0.000000e+00> : vector<8x128xf32>
    %94 = tpu.matmul %93, %26, %cst_34 {dimension_numbers = #tpu.dot_dimension_numbers<[1], [0], [0], [1], [0, 0, 1, 1], [], []>} : vector<8x32xbf16>, vector<32x128xbf16>, vector<8x128xf32> -> vector<8x128xf32>
    %95 = arith.addf %92, %94 : vector<8x128xf32>
    %96 = math.tanh %95 : vector<8x128xf32>
    %97 = arith.negf %95 : vector<8x128xf32>
    %98 = math.exp %97 : vector<8x128xf32>
    %cst_35 = arith.constant 1.000000e+00 : f32
    %99 = vector.broadcast %cst_35 : f32 to vector<8x128xf32>
    %100 = arith.addf %99, %98 : vector<8x128xf32>
    %101 = arith.divf %99, %100 : vector<8x128xf32>
    %102 = arith.select %18, %96, %101 : vector<8x128xi1>, vector<8x128xf32>
    %103 = vector.extract_strided_slice %102 {offsets = [0, 0], sizes = [8, 32], strides = [1, 1]} : vector<8x128xf32> to vector<8x32xf32>
    %104 = vector.extract_strided_slice %102 {offsets = [0, 32], sizes = [8, 32], strides = [1, 1]} : vector<8x128xf32> to vector<8x32xf32>
    %105 = vector.extract_strided_slice %102 {offsets = [0, 64], sizes = [8, 32], strides = [1, 1]} : vector<8x128xf32> to vector<8x32xf32>
    %106 = vector.extract_strided_slice %102 {offsets = [0, 96], sizes = [8, 32], strides = [1, 1]} : vector<8x128xf32> to vector<8x32xf32>
    %107 = arith.mulf %104, %88 : vector<8x32xf32>
    %108 = arith.mulf %103, %105 : vector<8x32xf32>
    %109 = arith.addf %107, %108 : vector<8x32xf32>
    %110 = math.tanh %109 : vector<8x32xf32>
    %111 = arith.mulf %106, %110 : vector<8x32xf32>
    %c24_36 = arith.constant 24 : index
    %c0_37 = arith.constant 0 : index
    %112 = vector.load %arg13[%c24_36, %c0_37] : memref<64x32xf32, #tpu.memory_space<vmem>>, vector<8x32xf32>
    tpu.vector_store %arg13[%c24_36, %c0_37], %111 {strides = array<i32>} : memref<64x32xf32, #tpu.memory_space<vmem>>, vector<8x32xf32>,
    %c32 = arith.constant 32 : index
    %c0_38 = arith.constant 0 : index
    %113 = vector.load %arg12[%c32, %c0_38] : memref<64x128xf32, #tpu.memory_space<vmem>>, vector<8x128xf32>
    %114 = arith.truncf %111 : vector<8x32xf32> to vector<8x32xbf16>
    %cst_39 = arith.constant dense<0.000000e+00> : vector<8x128xf32>
    %115 = tpu.matmul %114, %26, %cst_39 {dimension_numbers = #tpu.dot_dimension_numbers<[1], [0], [0], [1], [0, 0, 1, 1], [], []>} : vector<8x32xbf16>, vector<32x128xbf16>, vector<8x128xf32> -> vector<8x128xf32>
    %116 = arith.addf %113, %115 : vector<8x128xf32>
    %117 = math.tanh %116 : vector<8x128xf32>
    %118 = arith.negf %116 : vector<8x128xf32>
    %119 = math.exp %118 : vector<8x128xf32>
    %cst_40 = arith.constant 1.000000e+00 : f32
    %120 = vector.broadcast %cst_40 : f32 to vector<8x128xf32>
    %121 = arith.addf %120, %119 : vector<8x128xf32>
    %122 = arith.divf %120, %121 : vector<8x128xf32>
    %123 = arith.select %18, %117, %122 : vector<8x128xi1>, vector<8x128xf32>
    %124 = vector.extract_strided_slice %123 {offsets = [0, 0], sizes = [8, 32], strides = [1, 1]} : vector<8x128xf32> to vector<8x32xf32>
    %125 = vector.extract_strided_slice %123 {offsets = [0, 32], sizes = [8, 32], strides = [1, 1]} : vector<8x128xf32> to vector<8x32xf32>
    %126 = vector.extract_strided_slice %123 {offsets = [0, 64], sizes = [8, 32], strides = [1, 1]} : vector<8x128xf32> to vector<8x32xf32>
    %127 = vector.extract_strided_slice %123 {offsets = [0, 96], sizes = [8, 32], strides = [1, 1]} : vector<8x128xf32> to vector<8x32xf32>
    %128 = arith.mulf %125, %109 : vector<8x32xf32>
    %129 = arith.mulf %124, %126 : vector<8x32xf32>
    %130 = arith.addf %128, %129 : vector<8x32xf32>
    %131 = math.tanh %130 : vector<8x32xf32>
    %132 = arith.mulf %127, %131 : vector<8x32xf32>
    %c32_41 = arith.constant 32 : index
    %c0_42 = arith.constant 0 : index
    %133 = vector.load %arg13[%c32_41, %c0_42] : memref<64x32xf32, #tpu.memory_space<vmem>>, vector<8x32xf32>
    tpu.vector_store %arg13[%c32_41, %c0_42], %132 {strides = array<i32>} : memref<64x32xf32, #tpu.memory_space<vmem>>, vector<8x32xf32>,
    %c40 = arith.constant 40 : index
    %c0_43 = arith.constant 0 : index
    %134 = vector.load %arg12[%c40, %c0_43] : memref<64x128xf32, #tpu.memory_space<vmem>>, vector<8x128xf32>
    %135 = arith.truncf %132 : vector<8x32xf32> to vector<8x32xbf16>
    %cst_44 = arith.constant dense<0.000000e+00> : vector<8x128xf32>
    %136 = tpu.matmul %135, %26, %cst_44 {dimension_numbers = #tpu.dot_dimension_numbers<[1], [0], [0], [1], [0, 0, 1, 1], [], []>} : vector<8x32xbf16>, vector<32x128xbf16>, vector<8x128xf32> -> vector<8x128xf32>
    %137 = arith.addf %134, %136 : vector<8x128xf32>
    %138 = math.tanh %137 : vector<8x128xf32>
    %139 = arith.negf %137 : vector<8x128xf32>
    %140 = math.exp %139 : vector<8x128xf32>
    %cst_45 = arith.constant 1.000000e+00 : f32
    %141 = vector.broadcast %cst_45 : f32 to vector<8x128xf32>
    %142 = arith.addf %141, %140 : vector<8x128xf32>
    %143 = arith.divf %141, %142 : vector<8x128xf32>
    %144 = arith.select %18, %138, %143 : vector<8x128xi1>, vector<8x128xf32>
    %145 = vector.extract_strided_slice %144 {offsets = [0, 0], sizes = [8, 32], strides = [1, 1]} : vector<8x128xf32> to vector<8x32xf32>
    %146 = vector.extract_strided_slice %144 {offsets = [0, 32], sizes = [8, 32], strides = [1, 1]} : vector<8x128xf32> to vector<8x32xf32>
    %147 = vector.extract_strided_slice %144 {offsets = [0, 64], sizes = [8, 32], strides = [1, 1]} : vector<8x128xf32> to vector<8x32xf32>
    %148 = vector.extract_strided_slice %144 {offsets = [0, 96], sizes = [8, 32], strides = [1, 1]} : vector<8x128xf32> to vector<8x32xf32>
    %149 = arith.mulf %146, %130 : vector<8x32xf32>
    %150 = arith.mulf %145, %147 : vector<8x32xf32>
    %151 = arith.addf %149, %150 : vector<8x32xf32>
    %152 = math.tanh %151 : vector<8x32xf32>
    %153 = arith.mulf %148, %152 : vector<8x32xf32>
    %c40_46 = arith.constant 40 : index
    %c0_47 = arith.constant 0 : index
    %154 = vector.load %arg13[%c40_46, %c0_47] : memref<64x32xf32, #tpu.memory_space<vmem>>, vector<8x32xf32>
    tpu.vector_store %arg13[%c40_46, %c0_47], %153 {strides = array<i32>} : memref<64x32xf32, #tpu.memory_space<vmem>>, vector<8x32xf32>,
    %c48 = arith.constant 48 : index
    %c0_48 = arith.constant 0 : index
    %155 = vector.load %arg12[%c48, %c0_48] : memref<64x128xf32, #tpu.memory_space<vmem>>, vector<8x128xf32>
    %156 = arith.truncf %153 : vector<8x32xf32> to vector<8x32xbf16>
    %cst_49 = arith.constant dense<0.000000e+00> : vector<8x128xf32>
    %157 = tpu.matmul %156, %26, %cst_49 {dimension_numbers = #tpu.dot_dimension_numbers<[1], [0], [0], [1], [0, 0, 1, 1], [], []>} : vector<8x32xbf16>, vector<32x128xbf16>, vector<8x128xf32> -> vector<8x128xf32>
    %158 = arith.addf %155, %157 : vector<8x128xf32>
    %159 = math.tanh %158 : vector<8x128xf32>
    %160 = arith.negf %158 : vector<8x128xf32>
    %161 = math.exp %160 : vector<8x128xf32>
    %cst_50 = arith.constant 1.000000e+00 : f32
    %162 = vector.broadcast %cst_50 : f32 to vector<8x128xf32>
    %163 = arith.addf %162, %161 : vector<8x128xf32>
    %164 = arith.divf %162, %163 : vector<8x128xf32>
    %165 = arith.select %18, %159, %164 : vector<8x128xi1>, vector<8x128xf32>
    %166 = vector.extract_strided_slice %165 {offsets = [0, 0], sizes = [8, 32], strides = [1, 1]} : vector<8x128xf32> to vector<8x32xf32>
    %167 = vector.extract_strided_slice %165 {offsets = [0, 32], sizes = [8, 32], strides = [1, 1]} : vector<8x128xf32> to vector<8x32xf32>
    %168 = vector.extract_strided_slice %165 {offsets = [0, 64], sizes = [8, 32], strides = [1, 1]} : vector<8x128xf32> to vector<8x32xf32>
    %169 = vector.extract_strided_slice %165 {offsets = [0, 96], sizes = [8, 32], strides = [1, 1]} : vector<8x128xf32> to vector<8x32xf32>
    %170 = arith.mulf %167, %151 : vector<8x32xf32>
    %171 = arith.mulf %166, %168 : vector<8x32xf32>
    %172 = arith.addf %170, %171 : vector<8x32xf32>
    %173 = math.tanh %172 : vector<8x32xf32>
    %174 = arith.mulf %169, %173 : vector<8x32xf32>
    %c48_51 = arith.constant 48 : index
    %c0_52 = arith.constant 0 : index
    %175 = vector.load %arg13[%c48_51, %c0_52] : memref<64x32xf32, #tpu.memory_space<vmem>>, vector<8x32xf32>
    tpu.vector_store %arg13[%c48_51, %c0_52], %174 {strides = array<i32>} : memref<64x32xf32, #tpu.memory_space<vmem>>, vector<8x32xf32>,
    %c56 = arith.constant 56 : index
    %c0_53 = arith.constant 0 : index
    %176 = vector.load %arg12[%c56, %c0_53] : memref<64x128xf32, #tpu.memory_space<vmem>>, vector<8x128xf32>
    %177 = arith.truncf %174 : vector<8x32xf32> to vector<8x32xbf16>
    %cst_54 = arith.constant dense<0.000000e+00> : vector<8x128xf32>
    %178 = tpu.matmul %177, %26, %cst_54 {dimension_numbers = #tpu.dot_dimension_numbers<[1], [0], [0], [1], [0, 0, 1, 1], [], []>} : vector<8x32xbf16>, vector<32x128xbf16>, vector<8x128xf32> -> vector<8x128xf32>
    %179 = arith.addf %176, %178 : vector<8x128xf32>
    %180 = math.tanh %179 : vector<8x128xf32>
    %181 = arith.negf %179 : vector<8x128xf32>
    %182 = math.exp %181 : vector<8x128xf32>
    %cst_55 = arith.constant 1.000000e+00 : f32
    %183 = vector.broadcast %cst_55 : f32 to vector<8x128xf32>
    %184 = arith.addf %183, %182 : vector<8x128xf32>
    %185 = arith.divf %183, %184 : vector<8x128xf32>
    %186 = arith.select %18, %180, %185 : vector<8x128xi1>, vector<8x128xf32>
    %187 = vector.extract_strided_slice %186 {offsets = [0, 0], sizes = [8, 32], strides = [1, 1]} : vector<8x128xf32> to vector<8x32xf32>
    %188 = vector.extract_strided_slice %186 {offsets = [0, 32], sizes = [8, 32], strides = [1, 1]} : vector<8x128xf32> to vector<8x32xf32>
    %189 = vector.extract_strided_slice %186 {offsets = [0, 64], sizes = [8, 32], strides = [1, 1]} : vector<8x128xf32> to vector<8x32xf32>
    %190 = vector.extract_strided_slice %186 {offsets = [0, 96], sizes = [8, 32], strides = [1, 1]} : vector<8x128xf32> to vector<8x32xf32>
    %191 = arith.mulf %188, %172 : vector<8x32xf32>
    %192 = arith.mulf %187, %189 : vector<8x32xf32>
    %193 = arith.addf %191, %192 : vector<8x32xf32>
    %194 = math.tanh %193 : vector<8x32xf32>
    %195 = arith.mulf %190, %194 : vector<8x32xf32>
    %c56_56 = arith.constant 56 : index
    %c0_57 = arith.constant 0 : index
    %196 = vector.load %arg13[%c56_56, %c0_57] : memref<64x32xf32, #tpu.memory_space<vmem>>, vector<8x32xf32>
    tpu.vector_store %arg13[%c56_56, %c0_57], %195 {strides = array<i32>} : memref<64x32xf32, #tpu.memory_space<vmem>>, vector<8x32xf32>,
    %c0_58 = arith.constant 0 : index
    %c0_59 = arith.constant 0 : index
    %197 = vector.load %arg13[%c0_58, %c0_59] : memref<64x32xf32, #tpu.memory_space<vmem>>, vector<64x32xf32>
    %198 = arith.truncf %197 : vector<64x32xf32> to vector<64x32xbf16>
    %c0_60 = arith.constant 0 : index
    %c0_61 = arith.constant 0 : index
    %199 = vector.load %arg6[%c0_60, %c0_61] : memref<32x128xbf16, #tpu.memory_space<vmem>>, vector<32x128xbf16>
    %cst_62 = arith.constant dense<0.000000e+00> : vector<64x128xf32>
    %200 = tpu.matmul %198, %199, %cst_62 {dimension_numbers = #tpu.dot_dimension_numbers<[1], [0], [0], [1], [0, 0, 1, 1], [], []>} : vector<64x32xbf16>, vector<32x128xbf16>, vector<64x128xf32> -> vector<64x128xf32>
    %c0_63 = arith.constant 0 : index
    %c0_64 = arith.constant 0 : index
    %201 = vector.load %arg8[%c0_63, %c0_64] : memref<1x128xf32, #tpu.memory_space<vmem>>, vector<1x128xf32>
    %202 = vector.broadcast %201 : vector<1x128xf32> to vector<64x128xf32>
    %203 = arith.addf %200, %202 : vector<64x128xf32>
    %c0_65 = arith.constant 0 : index
    %c0_66 = arith.constant 0 : index
    %204 = vector.load %arg12[%c0_65, %c0_66] : memref<64x128xf32, #tpu.memory_space<vmem>>, vector<64x128xf32>
    tpu.vector_store %arg12[%c0_65, %c0_66], %203 {strides = array<i32>} : memref<64x128xf32, #tpu.memory_space<vmem>>, vector<64x128xf32>,
    %c0_67 = arith.constant 0 : index
    %c0_68 = arith.constant 0 : index
    %205 = vector.load %arg7[%c0_67, %c0_68] : memref<32x128xbf16, #tpu.memory_space<vmem>>, vector<32x128xbf16>
    %cst_69 = arith.constant 0.000000e+00 : f32
    %206 = vector.broadcast %cst_69 : f32 to vector<8x32xf32>
    %cst_70 = arith.constant 0.000000e+00 : f32
    %207 = vector.broadcast %cst_70 : f32 to vector<8x32xf32>
    %c0_71 = arith.constant 0 : index
    %c0_72 = arith.constant 0 : index
    %208 = vector.load %arg12[%c0_71, %c0_72] : memref<64x128xf32, #tpu.memory_space<vmem>>, vector<8x128xf32>
    %209 = arith.truncf %206 : vector<8x32xf32> to vector<8x32xbf16>
    %cst_73 = arith.constant dense<0.000000e+00> : vector<8x128xf32>
    %210 = tpu.matmul %209, %205, %cst_73 {dimension_numbers = #tpu.dot_dimension_numbers<[1], [0], [0], [1], [0, 0, 1, 1], [], []>} : vector<8x32xbf16>, vector<32x128xbf16>, vector<8x128xf32> -> vector<8x128xf32>
    %211 = arith.addf %208, %210 : vector<8x128xf32>
    %212 = math.tanh %211 : vector<8x128xf32>
    %213 = arith.negf %211 : vector<8x128xf32>
    %214 = math.exp %213 : vector<8x128xf32>
    %cst_74 = arith.constant 1.000000e+00 : f32
    %215 = vector.broadcast %cst_74 : f32 to vector<8x128xf32>
    %216 = arith.addf %215, %214 : vector<8x128xf32>
    %217 = arith.divf %215, %216 : vector<8x128xf32>
    %218 = arith.select %18, %212, %217 : vector<8x128xi1>, vector<8x128xf32>
    %219 = vector.extract_strided_slice %218 {offsets = [0, 0], sizes = [8, 32], strides = [1, 1]} : vector<8x128xf32> to vector<8x32xf32>
    %220 = vector.extract_strided_slice %218 {offsets = [0, 32], sizes = [8, 32], strides = [1, 1]} : vector<8x128xf32> to vector<8x32xf32>
    %221 = vector.extract_strided_slice %218 {offsets = [0, 64], sizes = [8, 32], strides = [1, 1]} : vector<8x128xf32> to vector<8x32xf32>
    %222 = vector.extract_strided_slice %218 {offsets = [0, 96], sizes = [8, 32], strides = [1, 1]} : vector<8x128xf32> to vector<8x32xf32>
    %223 = arith.mulf %220, %207 : vector<8x32xf32>
    %224 = arith.mulf %219, %221 : vector<8x32xf32>
    %225 = arith.addf %223, %224 : vector<8x32xf32>
    %226 = math.tanh %225 : vector<8x32xf32>
    %227 = arith.mulf %222, %226 : vector<8x32xf32>
    %c1_i32 = arith.constant 1 : i32
    %228 = vector.broadcast %c1_i32 : i32 to vector<8x32xi32>
    %229 = arith.cmpi eq, %12, %228 : vector<8x32xi32>
    %230 = arith.select %229, %227, %19 : vector<8x32xi1>, vector<8x32xf32>
    %c8_75 = arith.constant 8 : index
    %c0_76 = arith.constant 0 : index
    %231 = vector.load %arg12[%c8_75, %c0_76] : memref<64x128xf32, #tpu.memory_space<vmem>>, vector<8x128xf32>
    %232 = arith.truncf %227 : vector<8x32xf32> to vector<8x32xbf16>
    %cst_77 = arith.constant dense<0.000000e+00> : vector<8x128xf32>
    %233 = tpu.matmul %232, %205, %cst_77 {dimension_numbers = #tpu.dot_dimension_numbers<[1], [0], [0], [1], [0, 0, 1, 1], [], []>} : vector<8x32xbf16>, vector<32x128xbf16>, vector<8x128xf32> -> vector<8x128xf32>
    %234 = arith.addf %231, %233 : vector<8x128xf32>
    %235 = math.tanh %234 : vector<8x128xf32>
    %236 = arith.negf %234 : vector<8x128xf32>
    %237 = math.exp %236 : vector<8x128xf32>
    %cst_78 = arith.constant 1.000000e+00 : f32
    %238 = vector.broadcast %cst_78 : f32 to vector<8x128xf32>
    %239 = arith.addf %238, %237 : vector<8x128xf32>
    %240 = arith.divf %238, %239 : vector<8x128xf32>
    %241 = arith.select %18, %235, %240 : vector<8x128xi1>, vector<8x128xf32>
    %242 = vector.extract_strided_slice %241 {offsets = [0, 0], sizes = [8, 32], strides = [1, 1]} : vector<8x128xf32> to vector<8x32xf32>
    %243 = vector.extract_strided_slice %241 {offsets = [0, 32], sizes = [8, 32], strides = [1, 1]} : vector<8x128xf32> to vector<8x32xf32>
    %244 = vector.extract_strided_slice %241 {offsets = [0, 64], sizes = [8, 32], strides = [1, 1]} : vector<8x128xf32> to vector<8x32xf32>
    %245 = vector.extract_strided_slice %241 {offsets = [0, 96], sizes = [8, 32], strides = [1, 1]} : vector<8x128xf32> to vector<8x32xf32>
    %246 = arith.mulf %243, %225 : vector<8x32xf32>
    %247 = arith.mulf %242, %244 : vector<8x32xf32>
    %248 = arith.addf %246, %247 : vector<8x32xf32>
    %249 = math.tanh %248 : vector<8x32xf32>
    %250 = arith.mulf %245, %249 : vector<8x32xf32>
    %c2_i32 = arith.constant 2 : i32
    %251 = vector.broadcast %c2_i32 : i32 to vector<8x32xi32>
    %252 = arith.cmpi eq, %12, %251 : vector<8x32xi32>
    %253 = arith.select %252, %250, %230 : vector<8x32xi1>, vector<8x32xf32>
    %c16_79 = arith.constant 16 : index
    %c0_80 = arith.constant 0 : index
    %254 = vector.load %arg12[%c16_79, %c0_80] : memref<64x128xf32, #tpu.memory_space<vmem>>, vector<8x128xf32>
    %255 = arith.truncf %250 : vector<8x32xf32> to vector<8x32xbf16>
    %cst_81 = arith.constant dense<0.000000e+00> : vector<8x128xf32>
    %256 = tpu.matmul %255, %205, %cst_81 {dimension_numbers = #tpu.dot_dimension_numbers<[1], [0], [0], [1], [0, 0, 1, 1], [], []>} : vector<8x32xbf16>, vector<32x128xbf16>, vector<8x128xf32> -> vector<8x128xf32>
    %257 = arith.addf %254, %256 : vector<8x128xf32>
    %258 = math.tanh %257 : vector<8x128xf32>
    %259 = arith.negf %257 : vector<8x128xf32>
    %260 = math.exp %259 : vector<8x128xf32>
    %cst_82 = arith.constant 1.000000e+00 : f32
    %261 = vector.broadcast %cst_82 : f32 to vector<8x128xf32>
    %262 = arith.addf %261, %260 : vector<8x128xf32>
    %263 = arith.divf %261, %262 : vector<8x128xf32>
    %264 = arith.select %18, %258, %263 : vector<8x128xi1>, vector<8x128xf32>
    %265 = vector.extract_strided_slice %264 {offsets = [0, 0], sizes = [8, 32], strides = [1, 1]} : vector<8x128xf32> to vector<8x32xf32>
    %266 = vector.extract_strided_slice %264 {offsets = [0, 32], sizes = [8, 32], strides = [1, 1]} : vector<8x128xf32> to vector<8x32xf32>
    %267 = vector.extract_strided_slice %264 {offsets = [0, 64], sizes = [8, 32], strides = [1, 1]} : vector<8x128xf32> to vector<8x32xf32>
    %268 = vector.extract_strided_slice %264 {offsets = [0, 96], sizes = [8, 32], strides = [1, 1]} : vector<8x128xf32> to vector<8x32xf32>
    %269 = arith.mulf %266, %248 : vector<8x32xf32>
    %270 = arith.mulf %265, %267 : vector<8x32xf32>
    %271 = arith.addf %269, %270 : vector<8x32xf32>
    %272 = math.tanh %271 : vector<8x32xf32>
    %273 = arith.mulf %268, %272 : vector<8x32xf32>
    %c3_i32 = arith.constant 3 : i32
    %274 = vector.broadcast %c3_i32 : i32 to vector<8x32xi32>
    %275 = arith.cmpi eq, %12, %274 : vector<8x32xi32>
    %276 = arith.select %275, %273, %253 : vector<8x32xi1>, vector<8x32xf32>
    %c24_83 = arith.constant 24 : index
    %c0_84 = arith.constant 0 : index
    %277 = vector.load %arg12[%c24_83, %c0_84] : memref<64x128xf32, #tpu.memory_space<vmem>>, vector<8x128xf32>
    %278 = arith.truncf %273 : vector<8x32xf32> to vector<8x32xbf16>
    %cst_85 = arith.constant dense<0.000000e+00> : vector<8x128xf32>
    %279 = tpu.matmul %278, %205, %cst_85 {dimension_numbers = #tpu.dot_dimension_numbers<[1], [0], [0], [1], [0, 0, 1, 1], [], []>} : vector<8x32xbf16>, vector<32x128xbf16>, vector<8x128xf32> -> vector<8x128xf32>
    %280 = arith.addf %277, %279 : vector<8x128xf32>
    %281 = math.tanh %280 : vector<8x128xf32>
    %282 = arith.negf %280 : vector<8x128xf32>
    %283 = math.exp %282 : vector<8x128xf32>
    %cst_86 = arith.constant 1.000000e+00 : f32
    %284 = vector.broadcast %cst_86 : f32 to vector<8x128xf32>
    %285 = arith.addf %284, %283 : vector<8x128xf32>
    %286 = arith.divf %284, %285 : vector<8x128xf32>
    %287 = arith.select %18, %281, %286 : vector<8x128xi1>, vector<8x128xf32>
    %288 = vector.extract_strided_slice %287 {offsets = [0, 0], sizes = [8, 32], strides = [1, 1]} : vector<8x128xf32> to vector<8x32xf32>
    %289 = vector.extract_strided_slice %287 {offsets = [0, 32], sizes = [8, 32], strides = [1, 1]} : vector<8x128xf32> to vector<8x32xf32>
    %290 = vector.extract_strided_slice %287 {offsets = [0, 64], sizes = [8, 32], strides = [1, 1]} : vector<8x128xf32> to vector<8x32xf32>
    %291 = vector.extract_strided_slice %287 {offsets = [0, 96], sizes = [8, 32], strides = [1, 1]} : vector<8x128xf32> to vector<8x32xf32>
    %292 = arith.mulf %289, %271 : vector<8x32xf32>
    %293 = arith.mulf %288, %290 : vector<8x32xf32>
    %294 = arith.addf %292, %293 : vector<8x32xf32>
    %295 = math.tanh %294 : vector<8x32xf32>
    %296 = arith.mulf %291, %295 : vector<8x32xf32>
    %c4_i32 = arith.constant 4 : i32
    %297 = vector.broadcast %c4_i32 : i32 to vector<8x32xi32>
    %298 = arith.cmpi eq, %12, %297 : vector<8x32xi32>
    %299 = arith.select %298, %296, %276 : vector<8x32xi1>, vector<8x32xf32>
    %c32_87 = arith.constant 32 : index
    %c0_88 = arith.constant 0 : index
    %300 = vector.load %arg12[%c32_87, %c0_88] : memref<64x128xf32, #tpu.memory_space<vmem>>, vector<8x128xf32>
    %301 = arith.truncf %296 : vector<8x32xf32> to vector<8x32xbf16>
    %cst_89 = arith.constant dense<0.000000e+00> : vector<8x128xf32>
    %302 = tpu.matmul %301, %205, %cst_89 {dimension_numbers = #tpu.dot_dimension_numbers<[1], [0], [0], [1], [0, 0, 1, 1], [], []>} : vector<8x32xbf16>, vector<32x128xbf16>, vector<8x128xf32> -> vector<8x128xf32>
    %303 = arith.addf %300, %302 : vector<8x128xf32>
    %304 = math.tanh %303 : vector<8x128xf32>
    %305 = arith.negf %303 : vector<8x128xf32>
    %306 = math.exp %305 : vector<8x128xf32>
    %cst_90 = arith.constant 1.000000e+00 : f32
    %307 = vector.broadcast %cst_90 : f32 to vector<8x128xf32>
    %308 = arith.addf %307, %306 : vector<8x128xf32>
    %309 = arith.divf %307, %308 : vector<8x128xf32>
    %310 = arith.select %18, %304, %309 : vector<8x128xi1>, vector<8x128xf32>
    %311 = vector.extract_strided_slice %310 {offsets = [0, 0], sizes = [8, 32], strides = [1, 1]} : vector<8x128xf32> to vector<8x32xf32>
    %312 = vector.extract_strided_slice %310 {offsets = [0, 32], sizes = [8, 32], strides = [1, 1]} : vector<8x128xf32> to vector<8x32xf32>
    %313 = vector.extract_strided_slice %310 {offsets = [0, 64], sizes = [8, 32], strides = [1, 1]} : vector<8x128xf32> to vector<8x32xf32>
    %314 = vector.extract_strided_slice %310 {offsets = [0, 96], sizes = [8, 32], strides = [1, 1]} : vector<8x128xf32> to vector<8x32xf32>
    %315 = arith.mulf %312, %294 : vector<8x32xf32>
    %316 = arith.mulf %311, %313 : vector<8x32xf32>
    %317 = arith.addf %315, %316 : vector<8x32xf32>
    %318 = math.tanh %317 : vector<8x32xf32>
    %319 = arith.mulf %314, %318 : vector<8x32xf32>
    %c5_i32 = arith.constant 5 : i32
    %320 = vector.broadcast %c5_i32 : i32 to vector<8x32xi32>
    %321 = arith.cmpi eq, %12, %320 : vector<8x32xi32>
    %322 = arith.select %321, %319, %299 : vector<8x32xi1>, vector<8x32xf32>
    %c40_91 = arith.constant 40 : index
    %c0_92 = arith.constant 0 : index
    %323 = vector.load %arg12[%c40_91, %c0_92] : memref<64x128xf32, #tpu.memory_space<vmem>>, vector<8x128xf32>
    %324 = arith.truncf %319 : vector<8x32xf32> to vector<8x32xbf16>
    %cst_93 = arith.constant dense<0.000000e+00> : vector<8x128xf32>
    %325 = tpu.matmul %324, %205, %cst_93 {dimension_numbers = #tpu.dot_dimension_numbers<[1], [0], [0], [1], [0, 0, 1, 1], [], []>} : vector<8x32xbf16>, vector<32x128xbf16>, vector<8x128xf32> -> vector<8x128xf32>
    %326 = arith.addf %323, %325 : vector<8x128xf32>
    %327 = math.tanh %326 : vector<8x128xf32>
    %328 = arith.negf %326 : vector<8x128xf32>
    %329 = math.exp %328 : vector<8x128xf32>
    %cst_94 = arith.constant 1.000000e+00 : f32
    %330 = vector.broadcast %cst_94 : f32 to vector<8x128xf32>
    %331 = arith.addf %330, %329 : vector<8x128xf32>
    %332 = arith.divf %330, %331 : vector<8x128xf32>
    %333 = arith.select %18, %327, %332 : vector<8x128xi1>, vector<8x128xf32>
    %334 = vector.extract_strided_slice %333 {offsets = [0, 0], sizes = [8, 32], strides = [1, 1]} : vector<8x128xf32> to vector<8x32xf32>
    %335 = vector.extract_strided_slice %333 {offsets = [0, 32], sizes = [8, 32], strides = [1, 1]} : vector<8x128xf32> to vector<8x32xf32>
    %336 = vector.extract_strided_slice %333 {offsets = [0, 64], sizes = [8, 32], strides = [1, 1]} : vector<8x128xf32> to vector<8x32xf32>
    %337 = vector.extract_strided_slice %333 {offsets = [0, 96], sizes = [8, 32], strides = [1, 1]} : vector<8x128xf32> to vector<8x32xf32>
    %338 = arith.mulf %335, %317 : vector<8x32xf32>
    %339 = arith.mulf %334, %336 : vector<8x32xf32>
    %340 = arith.addf %338, %339 : vector<8x32xf32>
    %341 = math.tanh %340 : vector<8x32xf32>
    %342 = arith.mulf %337, %341 : vector<8x32xf32>
    %c6_i32 = arith.constant 6 : i32
    %343 = vector.broadcast %c6_i32 : i32 to vector<8x32xi32>
    %344 = arith.cmpi eq, %12, %343 : vector<8x32xi32>
    %345 = arith.select %344, %342, %322 : vector<8x32xi1>, vector<8x32xf32>
    %c48_95 = arith.constant 48 : index
    %c0_96 = arith.constant 0 : index
    %346 = vector.load %arg12[%c48_95, %c0_96] : memref<64x128xf32, #tpu.memory_space<vmem>>, vector<8x128xf32>
    %347 = arith.truncf %342 : vector<8x32xf32> to vector<8x32xbf16>
    %cst_97 = arith.constant dense<0.000000e+00> : vector<8x128xf32>
    %348 = tpu.matmul %347, %205, %cst_97 {dimension_numbers = #tpu.dot_dimension_numbers<[1], [0], [0], [1], [0, 0, 1, 1], [], []>} : vector<8x32xbf16>, vector<32x128xbf16>, vector<8x128xf32> -> vector<8x128xf32>
    %349 = arith.addf %346, %348 : vector<8x128xf32>
    %350 = math.tanh %349 : vector<8x128xf32>
    %351 = arith.negf %349 : vector<8x128xf32>
    %352 = math.exp %351 : vector<8x128xf32>
    %cst_98 = arith.constant 1.000000e+00 : f32
    %353 = vector.broadcast %cst_98 : f32 to vector<8x128xf32>
    %354 = arith.addf %353, %352 : vector<8x128xf32>
    %355 = arith.divf %353, %354 : vector<8x128xf32>
    %356 = arith.select %18, %350, %355 : vector<8x128xi1>, vector<8x128xf32>
    %357 = vector.extract_strided_slice %356 {offsets = [0, 0], sizes = [8, 32], strides = [1, 1]} : vector<8x128xf32> to vector<8x32xf32>
    %358 = vector.extract_strided_slice %356 {offsets = [0, 32], sizes = [8, 32], strides = [1, 1]} : vector<8x128xf32> to vector<8x32xf32>
    %359 = vector.extract_strided_slice %356 {offsets = [0, 64], sizes = [8, 32], strides = [1, 1]} : vector<8x128xf32> to vector<8x32xf32>
    %360 = vector.extract_strided_slice %356 {offsets = [0, 96], sizes = [8, 32], strides = [1, 1]} : vector<8x128xf32> to vector<8x32xf32>
    %361 = arith.mulf %358, %340 : vector<8x32xf32>
    %362 = arith.mulf %357, %359 : vector<8x32xf32>
    %363 = arith.addf %361, %362 : vector<8x32xf32>
    %364 = math.tanh %363 : vector<8x32xf32>
    %365 = arith.mulf %360, %364 : vector<8x32xf32>
    %c7_i32 = arith.constant 7 : i32
    %366 = vector.broadcast %c7_i32 : i32 to vector<8x32xi32>
    %367 = arith.cmpi eq, %12, %366 : vector<8x32xi32>
    %368 = arith.select %367, %365, %345 : vector<8x32xi1>, vector<8x32xf32>
    %c56_99 = arith.constant 56 : index
    %c0_100 = arith.constant 0 : index
    %369 = vector.load %arg12[%c56_99, %c0_100] : memref<64x128xf32, #tpu.memory_space<vmem>>, vector<8x128xf32>
    %370 = arith.truncf %365 : vector<8x32xf32> to vector<8x32xbf16>
    %cst_101 = arith.constant dense<0.000000e+00> : vector<8x128xf32>
    %371 = tpu.matmul %370, %205, %cst_101 {dimension_numbers = #tpu.dot_dimension_numbers<[1], [0], [0], [1], [0, 0, 1, 1], [], []>} : vector<8x32xbf16>, vector<32x128xbf16>, vector<8x128xf32> -> vector<8x128xf32>
    %372 = arith.addf %369, %371 : vector<8x128xf32>
    %373 = math.tanh %372 : vector<8x128xf32>
    %374 = arith.negf %372 : vector<8x128xf32>
    %375 = math.exp %374 : vector<8x128xf32>
    %cst_102 = arith.constant 1.000000e+00 : f32
    %376 = vector.broadcast %cst_102 : f32 to vector<8x128xf32>
    %377 = arith.addf %376, %375 : vector<8x128xf32>
    %378 = arith.divf %376, %377 : vector<8x128xf32>
    %379 = arith.select %18, %373, %378 : vector<8x128xi1>, vector<8x128xf32>
    %380 = vector.extract_strided_slice %379 {offsets = [0, 0], sizes = [8, 32], strides = [1, 1]} : vector<8x128xf32> to vector<8x32xf32>
    %381 = vector.extract_strided_slice %379 {offsets = [0, 32], sizes = [8, 32], strides = [1, 1]} : vector<8x128xf32> to vector<8x32xf32>
    %382 = vector.extract_strided_slice %379 {offsets = [0, 64], sizes = [8, 32], strides = [1, 1]} : vector<8x128xf32> to vector<8x32xf32>
    %383 = vector.extract_strided_slice %379 {offsets = [0, 96], sizes = [8, 32], strides = [1, 1]} : vector<8x128xf32> to vector<8x32xf32>
    %384 = arith.mulf %381, %363 : vector<8x32xf32>
    %385 = arith.mulf %380, %382 : vector<8x32xf32>
    %386 = arith.addf %384, %385 : vector<8x32xf32>
    %387 = math.tanh %386 : vector<8x32xf32>
    %388 = arith.mulf %383, %387 : vector<8x32xf32>
    %c8_i32 = arith.constant 8 : i32
    %389 = vector.broadcast %c8_i32 : i32 to vector<8x32xi32>
    %390 = arith.cmpi eq, %12, %389 : vector<8x32xi32>
    %391 = arith.select %390, %388, %368 : vector<8x32xi1>, vector<8x32xf32>
    %c0_103 = arith.constant 0 : index
    %c0_104 = arith.constant 0 : index
    %392 = vector.load %arg9[%c0_103, %c0_104] : memref<32x3xf32, #tpu.memory_space<vmem>>, vector<32x3xf32>
    %cst_105 = arith.constant dense<0.000000e+00> : vector<8x3xf32>
    %393 = tpu.matmul %391, %392, %cst_105 {dimension_numbers = #tpu.dot_dimension_numbers<[1], [0], [0], [1], [0, 0, 1, 1], [], []>} : vector<8x32xf32>, vector<32x3xf32>, vector<8x3xf32> -> vector<8x3xf32>
    %c0_106 = arith.constant 0 : index
    %c0_107 = arith.constant 0 : index
    %394 = vector.load %arg10[%c0_106, %c0_107] : memref<1x3xf32, #tpu.memory_space<vmem>>, vector<1x3xf32>
    %395 = vector.broadcast %394 : vector<1x3xf32> to vector<8x3xf32>
    %396 = arith.addf %393, %395 : vector<8x3xf32>
    %cst_108 = arith.constant dense<0xFF800000> : vector<8xf32>
    %397 = vector.multi_reduction <maximumf>, %396, %cst_108 [1] : vector<8x3xf32> to vector<8xf32>
    %398 = vector.shape_cast %397 : vector<8xf32> to vector<8x1xf32>
    %399 = vector.broadcast %398 : vector<8x1xf32> to vector<8x3xf32>
    %400 = arith.subf %396, %399 : vector<8x3xf32>
    %401 = math.exp %400 : vector<8x3xf32>
    %cst_109 = arith.constant dense<0.000000e+00> : vector<8xf32>
    %402 = vector.multi_reduction <add>, %401, %cst_109 [1] : vector<8x3xf32> to vector<8xf32>
    %403 = vector.shape_cast %402 : vector<8xf32> to vector<8x1xf32>
    %404 = vector.broadcast %403 : vector<8x1xf32> to vector<8x3xf32>
    %405 = arith.divf %401, %404 : vector<8x3xf32>
    %c0_110 = arith.constant 0 : index
    %c0_111 = arith.constant 0 : index
    %406 = vector.load %arg11[%c0_110, %c0_111] : memref<8x3xf32, #tpu.memory_space<vmem>>, vector<8x3xf32>
    tpu.vector_store %arg11[%c0_110, %c0_111], %405 {strides = array<i32>} : memref<8x3xf32, #tpu.memory_space<vmem>>, vector<8x3xf32>,
    return
  }
}

</mosaic_0001>

<llo_original>
// kernel: forward.1
$region0: #{forward.1}
  #allocation0 [shape = 'u32[]', space=smem, size = 0x4, offset = 0x4, fixed_abs, tag = 'smem constant byte address 0x4 - core index']
  #allocation1 [shape = 'u32[144,128]{1,0:T(1,128)}', space=vmem, size = 0x12000, scoped, tag = 'internal scratch']
  #allocation2 [shape = 'f32[64,128]{1,0:T(8,128)}', space=vmem, size = 0x8000, scoped, tag = 'scratch operand']
  #allocation3 [shape = 'f32[64,32]{1,0:T(8,128)}', space=vmem, size = 0x8000, scoped, tag = 'scratch operand']
  %s0 = inlined_call_operand.vmem [shape: s32[64,1], index: 0, kind: input, shape index: {}]
  %s1 = inlined_call_operand.vmem [shape: s32[8,1], index: 1, kind: input, shape index: {}]
  %s2 = inlined_call_operand.vmem [shape: bf16[64,16], index: 2, kind: input, shape index: {}]
  %s3 = inlined_call_operand.vmem [shape: bf16[16,128], index: 3, kind: input, shape index: {}]
  %s4 = inlined_call_operand.vmem [shape: bf16[32,128], index: 4, kind: input, shape index: {}]
  %s5 = inlined_call_operand.vmem [shape: f32[1,128], index: 5, kind: input, shape index: {}]
  %s6 = inlined_call_operand.vmem [shape: bf16[32,128], index: 6, kind: input, shape index: {}]
  %s7 = inlined_call_operand.vmem [shape: bf16[32,128], index: 7, kind: input, shape index: {}]
  %s8 = inlined_call_operand.vmem [shape: f32[1,128], index: 8, kind: input, shape index: {}]
  %s9 = inlined_call_operand.vmem [shape: f32[32,3], index: 9, kind: input, shape index: {}]
  %s10 = inlined_call_operand.vmem [shape: f32[1,3], index: 10, kind: input, shape index: {}]
  %s11 = inlined_call_operand.vmem [shape: f32[8,3], index: 11, kind: output, shape index: {}]
  %s12 = sld [smem:[#allocation0]]
  $region54: #{forward.1} parent=0
    _
  %s14 = ssub.s32 1, %s12
  %s15 = scalar_select 0, %s14, %s12
  // Predicated region
  $region2: #{forward.1} parent=0 // pred_check
    _
  $region3: #{forward.1} parent=0 // pred_check_branch
    %17 = sbr.rel (0) target = $region5
  $region4: #{forward.1} parent=0 // pred_region
    _
  $region5: #{forward.1} parent=0 // pred_fallthru
    _
  // Predicated region
  $region6: #{forward.1} parent=0 // pred_check
    _
  $region7: #{forward.1} parent=0 // pred_check_branch
    %19 = sbr.rel (0) target = $region9
  $region8: #{forward.1} parent=0 // pred_region
    _
  $region9: #{forward.1} parent=0 // pred_fallthru
    _
  // Predicated region
  $region10: #{forward.1} parent=0 // pred_check
    _
  $region11: #{forward.1} parent=0 // pred_check_branch
    %21 = sbr.rel (0) target = $region13
  $region12: #{forward.1} parent=0 // pred_region
    _
  $region13: #{forward.1} parent=0 // pred_fallthru
    _
  // Predicated region
  $region14: #{forward.1} parent=0 // pred_check
    _
  $region15: #{forward.1} parent=0 // pred_check_branch
    %23 = sbr.rel (0) target = $region17
  $region16: #{forward.1} parent=0 // pred_region
    _
  $region17: #{forward.1} parent=0 // pred_fallthru
    _
  // Predicated region
  $region18: #{forward.1} parent=0 // pred_check
    _
  $region19: #{forward.1} parent=0 // pred_check_branch
    %25 = sbr.rel (0) target = $region21
  $region20: #{forward.1} parent=0 // pred_region
    _
  $region21: #{forward.1} parent=0 // pred_fallthru
    _
  // Predicated region
  $region22: #{forward.1} parent=0 // pred_check
    _
  $region23: #{forward.1} parent=0 // pred_check_branch
    %27 = sbr.rel (0) target = $region25
  $region24: #{forward.1} parent=0 // pred_region
    _
  $region25: #{forward.1} parent=0 // pred_fallthru
    _
  // Predicated region
  $region26: #{forward.1} parent=0 // pred_check
    _
  $region27: #{forward.1} parent=0 // pred_check_branch
    %29 = sbr.rel (0) target = $region29
  $region28: #{forward.1} parent=0 // pred_region
    _
  $region29: #{forward.1} parent=0 // pred_fallthru
    _
  // Predicated region
  $region30: #{forward.1} parent=0 // pred_check
    _
  $region31: #{forward.1} parent=0 // pred_check_branch
    %31 = sbr.rel (0) target = $region33
  $region32: #{forward.1} parent=0 // pred_region
    _
  $region33: #{forward.1} parent=0 // pred_fallthru
    _
  // Predicated region
  $region34: #{forward.1} parent=0 // pred_check
    _
  $region35: #{forward.1} parent=0 // pred_check_branch
    %33 = sbr.rel (0) target = $region37
  $region36: #{forward.1} parent=0 // pred_region
    _
  $region37: #{forward.1} parent=0 // pred_fallthru
    _
  // Predicated region
  $region38: #{forward.1} parent=0 // pred_check
    _
  $region39: #{forward.1} parent=0 // pred_check_branch
    %35 = sbr.rel (0) target = $region41
  $region40: #{forward.1} parent=0 // pred_region
    _
  $region41: #{forward.1} parent=0 // pred_fallthru
    _
  // Predicated region
  $region42: #{forward.1} parent=0 // pred_check
    _
  $region43: #{forward.1} parent=0 // pred_check_branch
    %37 = sbr.rel (0) target = $region45
  $region44: #{forward.1} parent=0 // pred_region
    _
  $region45: #{forward.1} parent=0 // pred_fallthru
    _
  %v39 = vlaneseq
  %v40 = vand.u32 %v39, 127
  %v41 = vld [vmem:[%s0] sm:$0xff]
  %v42 = vld [vmem:[%s0 + $0x8] sm:$0xff]
  %v43 = vld [vmem:[%s0 + $0x10] sm:$0xff]
  %v44 = vld [vmem:[%s0 + $0x18] sm:$0xff]
  %v45 = vld [vmem:[%s0 + $0x20] sm:$0xff]
  %v46 = vld [vmem:[%s0 + $0x28] sm:$0xff]
  %v47 = vld [vmem:[%s0 + $0x30] sm:$0xff]
  %v48 = vld [vmem:[%s0 + $0x38] sm:$0xff]
  %49 = vset.pattern.permute.xlu0 0
  %50 = vperm.xlu0 %49, %v41
  %v51 = vpop.permute.xlu0 %50
  %52 = vset.pattern.permute.xlu0 0
  %53 = vperm.xlu0 %52, %v42
  %v54 = vpop.permute.xlu0 %53
  %55 = vset.pattern.permute.xlu0 0
  %56 = vperm.xlu0 %55, %v43
  %v57 = vpop.permute.xlu0 %56
  %58 = vset.pattern.permute.xlu0 0
  %59 = vperm.xlu0 %58, %v44
  %v60 = vpop.permute.xlu0 %59
  %61 = vset.pattern.permute.xlu0 0
  %62 = vperm.xlu0 %61, %v45
  %v63 = vpop.permute.xlu0 %62
  %64 = vset.pattern.permute.xlu0 0
  %65 = vperm.xlu0 %64, %v46
  %v66 = vpop.permute.xlu0 %65
  %67 = vset.pattern.permute.xlu0 0
  %68 = vperm.xlu0 %67, %v47
  %v69 = vpop.permute.xlu0 %68
  %70 = vset.pattern.permute.xlu0 0
  %71 = vperm.xlu0 %70, %v48
  %v72 = vpop.permute.xlu0 %71
  %vm73 = vcmp.eq.s32.totalorder %v40, %v51
  %vm74 = vcmp.eq.s32.totalorder %v40, %v54
  %vm75 = vcmp.eq.s32.totalorder %v40, %v57
  %vm76 = vcmp.eq.s32.totalorder %v40, %v60
  %vm77 = vcmp.eq.s32.totalorder %v40, %v63
  %vm78 = vcmp.eq.s32.totalorder %v40, %v66
  %vm79 = vcmp.eq.s32.totalorder %v40, %v69
  %vm80 = vcmp.eq.s32.totalorder %v40, %v72
  %v81 = vsel %vm73, 1, 0
  %v82 = vsel %vm74, 1, 0
  %v83 = vsel %vm75, 1, 0
  %v84 = vsel %vm76, 1, 0
  %v85 = vsel %vm77, 1, 0
  %v86 = vsel %vm78, 1, 0
  %v87 = vsel %vm79, 1, 0
  %v88 = vsel %vm80, 1, 0
  %v89 = vcvt.s32.f32 %v81
  %v90 = vcvt.s32.f32 %v82
  %v91 = vcvt.s32.f32 %v83
  %v92 = vcvt.s32.f32 %v84
  %v93 = vcvt.s32.f32 %v85
  %v94 = vcvt.s32.f32 %v86
  %v95 = vcvt.s32.f32 %v87
  %v96 = vcvt.s32.f32 %v88
  %v97 = vpack.c.bf16 %v90, %v89
  %v98 = vpack.c.bf16 %v92, %v91
  %v99 = vpack.c.bf16 %v94, %v93
  %v100 = vpack.c.bf16 %v96, %v95
  %v101 = vld [vmem:[%s2] sm:$0xf]
  %v102 = vld [vmem:[%s2 + $0x4] sm:$0xf]
  %v103 = vld [vmem:[%s2 + $0x8] sm:$0xf]
  %v104 = vld [vmem:[%s2 + $0xc] sm:$0xf]
  %v105 = vld [vmem:[%s2 + $0x10] sm:$0xf]
  %v106 = vld [vmem:[%s2 + $0x14] sm:$0xf]
  %v107 = vld [vmem:[%s2 + $0x18] sm:$0xf]
  %v108 = vld [vmem:[%s2 + $0x1c] sm:$0xf]
  %v117 = vunpack.c.l.b16 %v101
  %v118 = vunpack.c.l.b16 %v102
  %v119 = vunpack.c.l.b16 %v103
  %v120 = vunpack.c.l.b16 %v104
  %v121 = vunpack.c.l.b16 %v105
  %v122 = vunpack.c.l.b16 %v106
  %v123 = vunpack.c.l.b16 %v107
  %v124 = vunpack.c.l.b16 %v108
  %v125 = vpack.c.b16 %v118, %v117
  %v126 = vpack.c.b16 %v120, %v119
  %v127 = vpack.c.b16 %v122, %v121
  %v128 = vpack.c.b16 %v124, %v123
  %vm133 = vcmask 523264
  %v135 = vsel %vm133, %v97, 0
  %v138 = vsel %vm133, %v98, 0
  %v141 = vsel %vm133, %v99, 0
  %v144 = vsel %vm133, %v100, 0
  %146 = vmatprep.subr.bf16.mxu0 0
  %147 = vmatpush1.bf16.msra.mxu0 %v125
  %148 = vmatprep.subr.bf16.mxu0 0
  %149 = vmatpush1.bf16.msra.mxu0 %v126
  %150 = vmatprep.subr.bf16.mxu0 0
  %151 = vmatpush1.bf16.msra.mxu0 %v127
  %152 = vmatprep.subr.bf16.mxu0 0
  %153 = vmatpush1.bf16.msra.mxu0 %v128
  %154 = vmatprep.subr.bf16.mxu0 0
  %155 = vmatpush1.bf16.msra.mxu0 0
  %156 = vmatprep.subr.bf16.mxu0 0
  %157 = vmatpush1.bf16.msra.mxu0 0
  %158 = vmatprep.subr.bf16.mxu0 0
  %159 = vmatpush1.bf16.msra.mxu0 0
  %160 = vmatprep.subr.bf16.mxu0 0
  %161 = vmatpush1.bf16.msra.mxu0 0
  %162 = vmatprep.subr.bf16.mxu0 0
  %163 = vmatpush1.bf16.msra.mxu0 0
  %164 = vmatprep.subr.bf16.mxu0 0
  %165 = vmatpush1.bf16.msra.mxu0 0
  %166 = vmatprep.subr.bf16.mxu0 0
  %167 = vmatpush1.bf16.msra.mxu0 0
  %168 = vmatprep.subr.bf16.mxu0 0
  %169 = vmatpush1.bf16.msra.mxu0 0
  %170 = vmatprep.subr.bf16.mxu0 0
  %171 = vmatpush1.bf16.msra.mxu0 0
  %172 = vmatprep.subr.bf16.mxu0 0
  %173 = vmatpush1.bf16.msra.mxu0 0
  %174 = vmatprep.subr.bf16.mxu0 0
  %175 = vmatpush1.bf16.msra.mxu0 0
  %176 = vmatprep.subr.bf16.mxu0 0
  %177 = vmatpush1.bf16.msra.mxu0 0
  %178 = vmatprep.mubr.bf16.mxu0 0
  %179 = vmatmul.mubr.bf16.gmra.mrb[0].mxu0 %v135
  %v180 = vpop.f32.mrb[0].mxu0
  %v181 = vadd.f32 0.0, %v180
  %v182 = vpop.f32.mrb[0].mxu0
  %v183 = vpop.f32.mrb[0].mxu0
  %v184 = vadd.f32 0.0, %v183
  %v185 = vpop.f32.mrb[0].mxu0
  %186 = vmatprep.mubr.bf16.mxu0 0
  %187 = vmatmul.mubr.bf16.gmra.mrb[0].mxu0 %v138
  %v188 = vpop.f32.mrb[0].mxu0
  %v189 = vadd.f32 0.0, %v188
  %v190 = vpop.f32.mrb[0].mxu0
  %v191 = vpop.f32.mrb[0].mxu0
  %v192 = vadd.f32 0.0, %v191
  %v193 = vpop.f32.mrb[0].mxu0
  %194 = vmatprep.mubr.bf16.mxu0 0
  %195 = vmatmul.mubr.bf16.gmra.mrb[0].mxu0 %v141
  %v196 = vpop.f32.mrb[0].mxu0
  %v197 = vadd.f32 0.0, %v196
  %v198 = vpop.f32.mrb[0].mxu0
  %v199 = vpop.f32.mrb[0].mxu0
  %v200 = vadd.f32 0.0, %v199
  %v201 = vpop.f32.mrb[0].mxu0
  %202 = vmatprep.mubr.bf16.mxu0 0
  %203 = vmatmul.mubr.bf16.gmra.mrb[0].mxu0 %v144
  %v204 = vpop.f32.mrb[0].mxu0
  %v205 = vadd.f32 0.0, %v204
  %v206 = vpop.f32.mrb[0].mxu0
  %v207 = vpop.f32.mrb[0].mxu0
  %v208 = vadd.f32 0.0, %v207
  %v209 = vpop.f32.mrb[0].mxu0
  %210 = vdwg.mxu0
  %v211 = vpack.c.bf16 %v184, %v181
  %v212 = vpack.c.bf16 %v192, %v189
  %v213 = vpack.c.bf16 %v200, %v197
  %v214 = vpack.c.bf16 %v208, %v205
  %v215 = vld [vmem:[%s1] sm:$0xff]
  %216 = vset.pattern.permute.xlu0 0
  %217 = vperm.xlu0 %216, %v215
  %v218 = vpop.permute.xlu0 %217
  %vm219 = vcmp.ge.s32.totalorder %v40, 64
  %vm220 = vcmp.lt.s32.totalorder %v40, 96
  %vm221 = vmand %vm219, %vm220
  %v222 = vld [vmem:[%s3] sm:$0xf]
  %v223 = vld [vmem:[%s3 + $0x4] sm:$0xf]
  %v224 = vld [vmem:[%s5] sm:$0x1]
  %v226 = vlaneseq
  %v227 = vshrl.u32 %v226, 7
  %v228 = vsub.s32 0, %v227
  %v229 = vrot.slane %v224, %v228
  %v233 = vunpack.c.l.b16 %v222
  %v234 = vunpack.c.l.b16 %v223
  %v235 = vpack.c.b16 %v234, %v233
  %vm237 = vcmask 130048
  %v239 = vsel %vm237, %v211, 0
  %v242 = vsel %vm237, %v212, 0
  %v245 = vsel %vm237, %v213, 0
  %v248 = vsel %vm237, %v214, 0
  %250 = vmatprep.subr.bf16.mxu0 0
  %251 = vmatpush1.bf16.msra.mxu0 %v235
  %252 = vmatprep.subr.bf16.mxu0 0
  %253 = vmatpush1.bf16.msra.mxu0 0
  %254 = vmatprep.subr.bf16.mxu0 0
  %255 = vmatpush1.bf16.msra.mxu0 0
  %256 = vmatprep.subr.bf16.mxu0 0
  %257 = vmatpush1.bf16.msra.mxu0 0
  %258 = vmatprep.subr.bf16.mxu0 0
  %259 = vmatpush1.bf16.msra.mxu0 0
  %260 = vmatprep.subr.bf16.mxu0 0
  %261 = vmatpush1.bf16.msra.mxu0 0
  %262 = vmatprep.subr.bf16.mxu0 0
  %263 = vmatpush1.bf16.msra.mxu0 0
  %264 = vmatprep.subr.bf16.mxu0 0
  %265 = vmatpush1.bf16.msra.mxu0 0
  %266 = vmatprep.subr.bf16.mxu0 0
  %267 = vmatpush1.bf16.msra.mxu0 0
  %268 = vmatprep.subr.bf16.mxu0 0
  %269 = vmatpush1.bf16.msra.mxu0 0
  %270 = vmatprep.subr.bf16.mxu0 0
  %271 = vmatpush1.bf16.msra.mxu0 0
  %272 = vmatprep.subr.bf16.mxu0 0
  %273 = vmatpush1.bf16.msra.mxu0 0
  %274 = vmatprep.subr.bf16.mxu0 0
  %275 = vmatpush1.bf16.msra.mxu0 0
  %276 = vmatprep.subr.bf16.mxu0 0
  %277 = vmatpush1.bf16.msra.mxu0 0
  %278 = vmatprep.subr.bf16.mxu0 0
  %279 = vmatpush1.bf16.msra.mxu0 0
  %280 = vmatprep.subr.bf16.mxu0 0
  %281 = vmatpush1.bf16.msra.mxu0 0
  %282 = vmatprep.mubr.bf16.mxu0 0
  %283 = vmatmul.mubr.bf16.gmra.mrb[0].mxu0 %v239
  %v284 = vpop.f32.mrb[0].mxu0
  %v285 = vadd.f32 %v229, %v284
  %v286 = vpop.f32.mrb[0].mxu0
  %v287 = vpop.f32.mrb[0].mxu0
  %v288 = vadd.f32 %v229, %v287
  %v289 = vpop.f32.mrb[0].mxu0
  %290 = vmatprep.mubr.bf16.mxu0 0
  %291 = vmatmul.mubr.bf16.gmra.mrb[0].mxu0 %v242
  %v292 = vpop.f32.mrb[0].mxu0
  %v293 = vadd.f32 %v229, %v292
  %v294 = vpop.f32.mrb[0].mxu0
  %v295 = vpop.f32.mrb[0].mxu0
  %v296 = vadd.f32 %v229, %v295
  %v297 = vpop.f32.mrb[0].mxu0
  %298 = vmatprep.mubr.bf16.mxu0 0
  %299 = vmatmul.mubr.bf16.gmra.mrb[0].mxu0 %v245
  %v300 = vpop.f32.mrb[0].mxu0
  %v301 = vadd.f32 %v229, %v300
  %v302 = vpop.f32.mrb[0].mxu0
  %v303 = vpop.f32.mrb[0].mxu0
  %v304 = vadd.f32 %v229, %v303
  %v305 = vpop.f32.mrb[0].mxu0
  %306 = vmatprep.mubr.bf16.mxu0 0
  %307 = vmatmul.mubr.bf16.gmra.mrb[0].mxu0 %v248
  %v308 = vpop.f32.mrb[0].mxu0
  %v309 = vadd.f32 %v229, %v308
  %v310 = vpop.f32.mrb[0].mxu0
  %v311 = vpop.f32.mrb[0].mxu0
  %v312 = vadd.f32 %v229, %v311
  %v313 = vpop.f32.mrb[0].mxu0
  %314 = vdwg.mxu0
  %315 = vst [vmem:[#allocation2] sm:$0xff] %v285
  %316 = vst [vmem:[#allocation2 + $0x8] sm:$0xff] %v288
  %317 = vst [vmem:[#allocation2 + $0x10] sm:$0xff] %v293
  %318 = vst [vmem:[#allocation2 + $0x18] sm:$0xff] %v296
  %319 = vst [vmem:[#allocation2 + $0x20] sm:$0xff] %v301
  %320 = vst [vmem:[#allocation2 + $0x28] sm:$0xff] %v304
  %321 = vst [vmem:[#allocation2 + $0x30] sm:$0xff] %v309
  %322 = vst [vmem:[#allocation2 + $0x38] sm:$0xff] %v312
  %v323 = vld [vmem:[%s4] sm:$0xf]
  %v324 = vld [vmem:[%s4 + $0x4] sm:$0xf]
  %v325 = vld [vmem:[%s4 + $0x8] sm:$0xf]
  %v326 = vld [vmem:[%s4 + $0xc] sm:$0xf]
  %v327 = vld [vmem:[#allocation2] sm:$0xff]
  %v332 = vunpack.c.l.b16 %v323
  %v333 = vunpack.c.l.b16 %v324
  %v334 = vunpack.c.l.b16 %v325
  %v335 = vunpack.c.l.b16 %v326
  %v336 = vpack.c.b16 %v333, %v332
  %v337 = vpack.c.b16 %v335, %v334
  %vm340 = vcmask 261120
  %v342 = vsel %vm340, 0, 0
  %344 = vmatprep.subr.bf16.mxu0 0
  %345 = vmatpush1.bf16.msra.mxu0 %v336
  %346 = vmatprep.subr.bf16.mxu0 0
  %347 = vmatpush1.bf16.msra.mxu0 %v337
  %348 = vmatprep.subr.bf16.mxu0 0
  %349 = vmatpush1.bf16.msra.mxu0 0
  %350 = vmatprep.subr.bf16.mxu0 0
  %351 = vmatpush1.bf16.msra.mxu0 0
  %352 = vmatprep.subr.bf16.mxu0 0
  %353 = vmatpush1.bf16.msra.mxu0 0
  %354 = vmatprep.subr.bf16.mxu0 0
  %355 = vmatpush1.bf16.msra.mxu0 0
  %356 = vmatprep.subr.bf16.mxu0 0
  %357 = vmatpush1.bf16.msra.mxu0 0
  %358 = vmatprep.subr.bf16.mxu0 0
  %359 = vmatpush1.bf16.msra.mxu0 0
  %360 = vmatprep.subr.bf16.mxu0 0
  %361 = vmatpush1.bf16.msra.mxu0 0
  %362 = vmatprep.subr.bf16.mxu0 0
  %363 = vmatpush1.bf16.msra.mxu0 0
  %364 = vmatprep.subr.bf16.mxu0 0
  %365 = vmatpush1.bf16.msra.mxu0 0
  %366 = vmatprep.subr.bf16.mxu0 0
  %367 = vmatpush1.bf16.msra.mxu0 0
  %368 = vmatprep.subr.bf16.mxu0 0
  %369 = vmatpush1.bf16.msra.mxu0 0
  %370 = vmatprep.subr.bf16.mxu0 0
  %371 = vmatpush1.bf16.msra.mxu0 0
  %372 = vmatprep.subr.bf16.mxu0 0
  %373 = vmatpush1.bf16.msra.mxu0 0
  %374 = vmatprep.subr.bf16.mxu0 0
  %375 = vmatpush1.bf16.msra.mxu0 0
  %376 = vmatprep.mubr.bf16.mxu0 0
  %377 = vmatmul.mubr.bf16.gmra.mrb[0].mxu0 %v342
  %v378 = vpop.f32.mrb[0].mxu0
  %v379 = vadd.f32 0.0, %v378
  %v380 = vpop.f32.mrb[0].mxu0
  %v381 = vpop.f32.mrb[0].mxu0
  %v382 = vpop.f32.mrb[0].mxu0
  %383 = vdwg.mxu0
  %v384 = vadd.f32 %v327, %v379
  %v385 = vtanh.pop %v384
  %v386 = vxor.u32 %v384, 2147483648
  %v387 = vmul.f32 %v386, 1.442695
  %v388 = vpow.pop %v387
  %v389 = vadd.f32 %v388, 1.0
  %v390 = vrcp.pop %v389
  %v391 = vmul.f32 1.0, %v390
  %v392 = vsel %vm221, %v385, %v391
  %v393 = vmul.f32 %v392, 0.0
  %395 = vrot.lane.b32.xlu0 %v392, 64
  %v396 = vpop.permute.xlu0 %395
  %v398 = vmul.f32 %v392, %v396
  %400 = vrot.lane.b32.xlu0 %v398, 32
  %v401 = vpop.permute.xlu0 %400
  %v403 = vadd.f32 %v393, %v401
  %v404 = vtanh.pop %v403
  %406 = vrot.lane.b32.xlu0 %v404, 64
  %v407 = vpop.permute.xlu0 %406
  %v409 = vmul.f32 %v392, %v407
  %411 = vrot.lane.b32.xlu0 %v409, 32
  %v412 = vpop.permute.xlu0 %411
  %414 = vst.msk [vmem:[#allocation3] sm:$0xff] %vm340, %v412
  %v415 = vld [vmem:[#allocation2 + $0x8] sm:$0xff]
  %v416 = vpack.c.bf16 %v409, %v409
  %418 = vrot.lane.b32.xlu0 %v416, 32
  %v419 = vpop.permute.xlu0 %418
  %v421 = vsel %vm340, %v419, 0
  %423 = vmatprep.subr.bf16.mxu0 0
  %424 = vmatpush1.bf16.msra.mxu0 %v336
  %425 = vmatprep.subr.bf16.mxu0 0
  %426 = vmatpush1.bf16.msra.mxu0 %v337
  %427 = vmatprep.subr.bf16.mxu0 0
  %428 = vmatpush1.bf16.msra.mxu0 0
  %429 = vmatprep.subr.bf16.mxu0 0
  %430 = vmatpush1.bf16.msra.mxu0 0
  %431 = vmatprep.subr.bf16.mxu0 0
  %432 = vmatpush1.bf16.msra.mxu0 0
  %433 = vmatprep.subr.bf16.mxu0 0
  %434 = vmatpush1.bf16.msra.mxu0 0
  %435 = vmatprep.subr.bf16.mxu0 0
  %436 = vmatpush1.bf16.msra.mxu0 0
  %437 = vmatprep.subr.bf16.mxu0 0
  %438 = vmatpush1.bf16.msra.mxu0 0
  %439 = vmatprep.subr.bf16.mxu0 0
  %440 = vmatpush1.bf16.msra.mxu0 0
  %441 = vmatprep.subr.bf16.mxu0 0
  %442 = vmatpush1.bf16.msra.mxu0 0
  %443 = vmatprep.subr.bf16.mxu0 0
  %444 = vmatpush1.bf16.msra.mxu0 0
  %445 = vmatprep.subr.bf16.mxu0 0
  %446 = vmatpush1.bf16.msra.mxu0 0
  %447 = vmatprep.subr.bf16.mxu0 0
  %448 = vmatpush1.bf16.msra.mxu0 0
  %449 = vmatprep.subr.bf16.mxu0 0
  %450 = vmatpush1.bf16.msra.mxu0 0
  %451 = vmatprep.subr.bf16.mxu0 0
  %452 = vmatpush1.bf16.msra.mxu0 0
  %453 = vmatprep.subr.bf16.mxu0 0
  %454 = vmatpush1.bf16.msra.mxu0 0
  %455 = vmatprep.mubr.bf16.mxu0 0
  %456 = vmatmul.mubr.bf16.gmra.mrb[0].mxu0 %v421
  %v457 = vpop.f32.mrb[0].mxu0
  %v458 = vadd.f32 0.0, %v457
  %v459 = vpop.f32.mrb[0].mxu0
  %v460 = vpop.f32.mrb[0].mxu0
  %v461 = vpop.f32.mrb[0].mxu0
  %462 = vdwg.mxu0
  %v463 = vadd.f32 %v415, %v458
  %v464 = vtanh.pop %v463
  %v465 = vxor.u32 %v463, 2147483648
  %v466 = vmul.f32 %v465, 1.442695
  %v467 = vpow.pop %v466
  %v468 = vadd.f32 %v467, 1.0
  %v469 = vrcp.pop %v468
  %v470 = vmul.f32 1.0, %v469
  %v471 = vsel %vm221, %v464, %v470
  %v472 = vmul.f32 %v471, %v403
  %474 = vrot.lane.b32.xlu0 %v471, 64
  %v475 = vpop.permute.xlu0 %474
  %v477 = vmul.f32 %v471, %v475
  %479 = vrot.lane.b32.xlu0 %v477, 32
  %v480 = vpop.permute.xlu0 %479
  %v482 = vadd.f32 %v472, %v480
  %v483 = vtanh.pop %v482
  %485 = vrot.lane.b32.xlu0 %v483, 64
  %v486 = vpop.permute.xlu0 %485
  %v488 = vmul.f32 %v471, %v486
  %490 = vrot.lane.b32.xlu0 %v488, 32
  %v491 = vpop.permute.xlu0 %490
  %493 = vst.msk [vmem:[#allocation3 + $0x8] sm:$0xff] %vm340, %v491
  %v494 = vld [vmem:[#allocation2 + $0x10] sm:$0xff]
  %v495 = vpack.c.bf16 %v488, %v488
  %497 = vrot.lane.b32.xlu0 %v495, 32
  %v498 = vpop.permute.xlu0 %497
  %v500 = vsel %vm340, %v498, 0
  %502 = vmatprep.subr.bf16.mxu0 0
  %503 = vmatpush1.bf16.msra.mxu0 %v336
  %504 = vmatprep.subr.bf16.mxu0 0
  %505 = vmatpush1.bf16.msra.mxu0 %v337
  %506 = vmatprep.subr.bf16.mxu0 0
  %507 = vmatpush1.bf16.msra.mxu0 0
  %508 = vmatprep.subr.bf16.mxu0 0
  %509 = vmatpush1.bf16.msra.mxu0 0
  %510 = vmatprep.subr.bf16.mxu0 0
  %511 = vmatpush1.bf16.msra.mxu0 0
  %512 = vmatprep.subr.bf16.mxu0 0
  %513 = vmatpush1.bf16.msra.mxu0 0
  %514 = vmatprep.subr.bf16.mxu0 0
  %515 = vmatpush1.bf16.msra.mxu0 0
  %516 = vmatprep.subr.bf16.mxu0 0
  %517 = vmatpush1.bf16.msra.mxu0 0
  %518 = vmatprep.subr.bf16.mxu0 0
  %519 = vmatpush1.bf16.msra.mxu0 0
  %520 = vmatprep.subr.bf16.mxu0 0
  %521 = vmatpush1.bf16.msra.mxu0 0
  %522 = vmatprep.subr.bf16.mxu0 0
  %523 = vmatpush1.bf16.msra.mxu0 0
  %524 = vmatprep.subr.bf16.mxu0 0
  %525 = vmatpush1.bf16.msra.mxu0 0
  %526 = vmatprep.subr.bf16.mxu0 0
  %527 = vmatpush1.bf16.msra.mxu0 0
  %528 = vmatprep.subr.bf16.mxu0 0
  %529 = vmatpush1.bf16.msra.mxu0 0
  %530 = vmatprep.subr.bf16.mxu0 0
  %531 = vmatpush1.bf16.msra.mxu0 0
  %532 = vmatprep.subr.bf16.mxu0 0
  %533 = vmatpush1.bf16.msra.mxu0 0
  %534 = vmatprep.mubr.bf16.mxu0 0
  %535 = vmatmul.mubr.bf16.gmra.mrb[0].mxu0 %v500
  %v536 = vpop.f32.mrb[0].mxu0
  %v537 = vadd.f32 0.0, %v536
  %v538 = vpop.f32.mrb[0].mxu0
  %v539 = vpop.f32.mrb[0].mxu0
  %v540 = vpop.f32.mrb[0].mxu0
  %541 = vdwg.mxu0
  %v542 = vadd.f32 %v494, %v537
  %v543 = vtanh.pop %v542
  %v544 = vxor.u32 %v542, 2147483648
  %v545 = vmul.f32 %v544, 1.442695
  %v546 = vpow.pop %v545
  %v547 = vadd.f32 %v546, 1.0
  %v548 = vrcp.pop %v547
  %v549 = vmul.f32 1.0, %v548
  %v550 = vsel %vm221, %v543, %v549
  %v551 = vmul.f32 %v550, %v482
  %553 = vrot.lane.b32.xlu0 %v550, 64
  %v554 = vpop.permute.xlu0 %553
  %v556 = vmul.f32 %v550, %v554
  %558 = vrot.lane.b32.xlu0 %v556, 32
  %v559 = vpop.permute.xlu0 %558
  %v561 = vadd.f32 %v551, %v559
  %v562 = vtanh.pop %v561
  %564 = vrot.lane.b32.xlu0 %v562, 64
  %v565 = vpop.permute.xlu0 %564
  %v567 = vmul.f32 %v550, %v565
  %569 = vrot.lane.b32.xlu0 %v567, 32
  %v570 = vpop.permute.xlu0 %569
  %572 = vst.msk [vmem:[#allocation3 + $0x10] sm:$0xff] %vm340, %v570
  %v573 = vld [vmem:[#allocation2 + $0x18] sm:$0xff]
  %v574 = vpack.c.bf16 %v567, %v567
  %576 = vrot.lane.b32.xlu0 %v574, 32
  %v577 = vpop.permute.xlu0 %576
  %v579 = vsel %vm340, %v577, 0
  %581 = vmatprep.subr.bf16.mxu0 0
  %582 = vmatpush1.bf16.msra.mxu0 %v336
  %583 = vmatprep.subr.bf16.mxu0 0
  %584 = vmatpush1.bf16.msra.mxu0 %v337
  %585 = vmatprep.subr.bf16.mxu0 0
  %586 = vmatpush1.bf16.msra.mxu0 0
  %587 = vmatprep.subr.bf16.mxu0 0
  %588 = vmatpush1.bf16.msra.mxu0 0
  %589 = vmatprep.subr.bf16.mxu0 0
  %590 = vmatpush1.bf16.msra.mxu0 0
  %591 = vmatprep.subr.bf16.mxu0 0
  %592 = vmatpush1.bf16.msra.mxu0 0
  %593 = vmatprep.subr.bf16.mxu0 0
  %594 = vmatpush1.bf16.msra.mxu0 0
  %595 = vmatprep.subr.bf16.mxu0 0
  %596 = vmatpush1.bf16.msra.mxu0 0
  %597 = vmatprep.subr.bf16.mxu0 0
  %598 = vmatpush1.bf16.msra.mxu0 0
  %599 = vmatprep.subr.bf16.mxu0 0
  %600 = vmatpush1.bf16.msra.mxu0 0
  %601 = vmatprep.subr.bf16.mxu0 0
  %602 = vmatpush1.bf16.msra.mxu0 0
  %603 = vmatprep.subr.bf16.mxu0 0
  %604 = vmatpush1.bf16.msra.mxu0 0
  %605 = vmatprep.subr.bf16.mxu0 0
  %606 = vmatpush1.bf16.msra.mxu0 0
  %607 = vmatprep.subr.bf16.mxu0 0
  %608 = vmatpush1.bf16.msra.mxu0 0
  %609 = vmatprep.subr.bf16.mxu0 0
  %610 = vmatpush1.bf16.msra.mxu0 0
  %611 = vmatprep.subr.bf16.mxu0 0
  %612 = vmatpush1.bf16.msra.mxu0 0
  %613 = vmatprep.mubr.bf16.mxu0 0
  %614 = vmatmul.mubr.bf16.gmra.mrb[0].mxu0 %v579
  %v615 = vpop.f32.mrb[0].mxu0
  %v616 = vadd.f32 0.0, %v615
  %v617 = vpop.f32.mrb[0].mxu0
  %v618 = vpop.f32.mrb[0].mxu0
  %v619 = vpop.f32.mrb[0].mxu0
  %620 = vdwg.mxu0
  %v621 = vadd.f32 %v573, %v616
  %v622 = vtanh.pop %v621
  %v623 = vxor.u32 %v621, 2147483648
  %v624 = vmul.f32 %v623, 1.442695
  %v625 = vpow.pop %v624
  %v626 = vadd.f32 %v625, 1.0
  %v627 = vrcp.pop %v626
  %v628 = vmul.f32 1.0, %v627
  %v629 = vsel %vm221, %v622, %v628
  %v630 = vmul.f32 %v629, %v561
  %632 = vrot.lane.b32.xlu0 %v629, 64
  %v633 = vpop.permute.xlu0 %632
  %v635 = vmul.f32 %v629, %v633
  %637 = vrot.lane.b32.xlu0 %v635, 32
  %v638 = vpop.permute.xlu0 %637
  %v640 = vadd.f32 %v630, %v638
  %v641 = vtanh.pop %v640
  %643 = vrot.lane.b32.xlu0 %v641, 64
  %v644 = vpop.permute.xlu0 %643
  %v646 = vmul.f32 %v629, %v644
  %648 = vrot.lane.b32.xlu0 %v646, 32
  %v649 = vpop.permute.xlu0 %648
  %651 = vst.msk [vmem:[#allocation3 + $0x18] sm:$0xff] %vm340, %v649
  %v652 = vld [vmem:[#allocation2 + $0x20] sm:$0xff]
  %v653 = vpack.c.bf16 %v646, %v646
  %655 = vrot.lane.b32.xlu0 %v653, 32
  %v656 = vpop.permute.xlu0 %655
  %v658 = vsel %vm340, %v656, 0
  %660 = vmatprep.subr.bf16.mxu0 0
  %661 = vmatpush1.bf16.msra.mxu0 %v336
  %662 = vmatprep.subr.bf16.mxu0 0
  %663 = vmatpush1.bf16.msra.mxu0 %v337
  %664 = vmatprep.subr.bf16.mxu0 0
  %665 = vmatpush1.bf16.msra.mxu0 0
  %666 = vmatprep.subr.bf16.mxu0 0
  %667 = vmatpush1.bf16.msra.mxu0 0
  %668 = vmatprep.subr.bf16.mxu0 0
  %669 = vmatpush1.bf16.msra.mxu0 0
  %670 = vmatprep.subr.bf16.mxu0 0
  %671 = vmatpush1.bf16.msra.mxu0 0
  %672 = vmatprep.subr.bf16.mxu0 0
  %673 = vmatpush1.bf16.msra.mxu0 0
  %674 = vmatprep.subr.bf16.mxu0 0
  %675 = vmatpush1.bf16.msra.mxu0 0
  %676 = vmatprep.subr.bf16.mxu0 0
  %677 = vmatpush1.bf16.msra.mxu0 0
  %678 = vmatprep.subr.bf16.mxu0 0
  %679 = vmatpush1.bf16.msra.mxu0 0
  %680 = vmatprep.subr.bf16.mxu0 0
  %681 = vmatpush1.bf16.msra.mxu0 0
  %682 = vmatprep.subr.bf16.mxu0 0
  %683 = vmatpush1.bf16.msra.mxu0 0
  %684 = vmatprep.subr.bf16.mxu0 0
  %685 = vmatpush1.bf16.msra.mxu0 0
  %686 = vmatprep.subr.bf16.mxu0 0
  %687 = vmatpush1.bf16.msra.mxu0 0
  %688 = vmatprep.subr.bf16.mxu0 0
  %689 = vmatpush1.bf16.msra.mxu0 0
  %690 = vmatprep.subr.bf16.mxu0 0
  %691 = vmatpush1.bf16.msra.mxu0 0
  %692 = vmatprep.mubr.bf16.mxu0 0
  %693 = vmatmul.mubr.bf16.gmra.mrb[0].mxu0 %v658
  %v694 = vpop.f32.mrb[0].mxu0
  %v695 = vadd.f32 0.0, %v694
  %v696 = vpop.f32.mrb[0].mxu0
  %v697 = vpop.f32.mrb[0].mxu0
  %v698 = vpop.f32.mrb[0].mxu0
  %699 = vdwg.mxu0
  %v700 = vadd.f32 %v652, %v695
  %v701 = vtanh.pop %v700
  %v702 = vxor.u32 %v700, 2147483648
  %v703 = vmul.f32 %v702, 1.442695
  %v704 = vpow.pop %v703
  %v705 = vadd.f32 %v704, 1.0
  %v706 = vrcp.pop %v705
  %v707 = vmul.f32 1.0, %v706
  %v708 = vsel %vm221, %v701, %v707
  %v709 = vmul.f32 %v708, %v640
  %711 = vrot.lane.b32.xlu0 %v708, 64
  %v712 = vpop.permute.xlu0 %711
  %v714 = vmul.f32 %v708, %v712
  %716 = vrot.lane.b32.xlu0 %v714, 32
  %v717 = vpop.permute.xlu0 %716
  %v719 = vadd.f32 %v709, %v717
  %v720 = vtanh.pop %v719
  %722 = vrot.lane.b32.xlu0 %v720, 64
  %v723 = vpop.permute.xlu0 %722
  %v725 = vmul.f32 %v708, %v723
  %727 = vrot.lane.b32.xlu0 %v725, 32
  %v728 = vpop.permute.xlu0 %727
  %730 = vst.msk [vmem:[#allocation3 + $0x20] sm:$0xff] %vm340, %v728
  %v731 = vld [vmem:[#allocation2 + $0x28] sm:$0xff]
  %v732 = vpack.c.bf16 %v725, %v725
  %734 = vrot.lane.b32.xlu0 %v732, 32
  %v735 = vpop.permute.xlu0 %734
  %v737 = vsel %vm340, %v735, 0
  %739 = vmatprep.subr.bf16.mxu0 0
  %740 = vmatpush1.bf16.msra.mxu0 %v336
  %741 = vmatprep.subr.bf16.mxu0 0
  %742 = vmatpush1.bf16.msra.mxu0 %v337
  %743 = vmatprep.subr.bf16.mxu0 0
  %744 = vmatpush1.bf16.msra.mxu0 0
  %745 = vmatprep.subr.bf16.mxu0 0
  %746 = vmatpush1.bf16.msra.mxu0 0
  %747 = vmatprep.subr.bf16.mxu0 0
  %748 = vmatpush1.bf16.msra.mxu0 0
  %749 = vmatprep.subr.bf16.mxu0 0
  %750 = vmatpush1.bf16.msra.mxu0 0
  %751 = vmatprep.subr.bf16.mxu0 0
  %752 = vmatpush1.bf16.msra.mxu0 0
  %753 = vmatprep.subr.bf16.mxu0 0
  %754 = vmatpush1.bf16.msra.mxu0 0
  %755 = vmatprep.subr.bf16.mxu0 0
  %756 = vmatpush1.bf16.msra.mxu0 0
  %757 = vmatprep.subr.bf16.mxu0 0
  %758 = vmatpush1.bf16.msra.mxu0 0
  %759 = vmatprep.subr.bf16.mxu0 0
  %760 = vmatpush1.bf16.msra.mxu0 0
  %761 = vmatprep.subr.bf16.mxu0 0
  %762 = vmatpush1.bf16.msra.mxu0 0
  %763 = vmatprep.subr.bf16.mxu0 0
  %764 = vmatpush1.bf16.msra.mxu0 0
  %765 = vmatprep.subr.bf16.mxu0 0
  %766 = vmatpush1.bf16.msra.mxu0 0
  %767 = vmatprep.subr.bf16.mxu0 0
  %768 = vmatpush1.bf16.msra.mxu0 0
  %769 = vmatprep.subr.bf16.mxu0 0
  %770 = vmatpush1.bf16.msra.mxu0 0
  %771 = vmatprep.mubr.bf16.mxu0 0
  %772 = vmatmul.mubr.bf16.gmra.mrb[0].mxu0 %v737
  %v773 = vpop.f32.mrb[0].mxu0
  %v774 = vadd.f32 0.0, %v773
  %v775 = vpop.f32.mrb[0].mxu0
  %v776 = vpop.f32.mrb[0].mxu0
  %v777 = vpop.f32.mrb[0].mxu0
  %778 = vdwg.mxu0
  %v779 = vadd.f32 %v731, %v774
  %v780 = vtanh.pop %v779
  %v781 = vxor.u32 %v779, 2147483648
  %v782 = vmul.f32 %v781, 1.442695
  %v783 = vpow.pop %v782
  %v784 = vadd.f32 %v783, 1.0
  %v785 = vrcp.pop %v784
  %v786 = vmul.f32 1.0, %v785
  %v787 = vsel %vm221, %v780, %v786
  %v788 = vmul.f32 %v787, %v719
  %790 = vrot.lane.b32.xlu0 %v787, 64
  %v791 = vpop.permute.xlu0 %790
  %v793 = vmul.f32 %v787, %v791
  %795 = vrot.lane.b32.xlu0 %v793, 32
  %v796 = vpop.permute.xlu0 %795
  %v798 = vadd.f32 %v788, %v796
  %v799 = vtanh.pop %v798
  %801 = vrot.lane.b32.xlu0 %v799, 64
  %v802 = vpop.permute.xlu0 %801
  %v804 = vmul.f32 %v787, %v802
  %806 = vrot.lane.b32.xlu0 %v804, 32
  %v807 = vpop.permute.xlu0 %806
  %809 = vst.msk [vmem:[#allocation3 + $0x28] sm:$0xff] %vm340, %v807
  %v810 = vld [vmem:[#allocation2 + $0x30] sm:$0xff]
  %v811 = vpack.c.bf16 %v804, %v804
  %813 = vrot.lane.b32.xlu0 %v811, 32
  %v814 = vpop.permute.xlu0 %813
  %v816 = vsel %vm340, %v814, 0
  %818 = vmatprep.subr.bf16.mxu0 0
  %819 = vmatpush1.bf16.msra.mxu0 %v336
  %820 = vmatprep.subr.bf16.mxu0 0
  %821 = vmatpush1.bf16.msra.mxu0 %v337
  %822 = vmatprep.subr.bf16.mxu0 0
  %823 = vmatpush1.bf16.msra.mxu0 0
  %824 = vmatprep.subr.bf16.mxu0 0
  %825 = vmatpush1.bf16.msra.mxu0 0
  %826 = vmatprep.subr.bf16.mxu0 0
  %827 = vmatpush1.bf16.msra.mxu0 0
  %828 = vmatprep.subr.bf16.mxu0 0
  %829 = vmatpush1.bf16.msra.mxu0 0
  %830 = vmatprep.subr.bf16.mxu0 0
  %831 = vmatpush1.bf16.msra.mxu0 0
  %832 = vmatprep.subr.bf16.mxu0 0
  %833 = vmatpush1.bf16.msra.mxu0 0
  %834 = vmatprep.subr.bf16.mxu0 0
  %835 = vmatpush1.bf16.msra.mxu0 0
  %836 = vmatprep.subr.bf16.mxu0 0
  %837 = vmatpush1.bf16.msra.mxu0 0
  %838 = vmatprep.subr.bf16.mxu0 0
  %839 = vmatpush1.bf16.msra.mxu0 0
  %840 = vmatprep.subr.bf16.mxu0 0
  %841 = vmatpush1.bf16.msra.mxu0 0
  %842 = vmatprep.subr.bf16.mxu0 0
  %843 = vmatpush1.bf16.msra.mxu0 0
  %844 = vmatprep.subr.bf16.mxu0 0
  %845 = vmatpush1.bf16.msra.mxu0 0
  %846 = vmatprep.subr.bf16.mxu0 0
  %847 = vmatpush1.bf16.msra.mxu0 0
  %848 = vmatprep.subr.bf16.mxu0 0
  %849 = vmatpush1.bf16.msra.mxu0 0
  %850 = vmatprep.mubr.bf16.mxu0 0
  %851 = vmatmul.mubr.bf16.gmra.mrb[0].mxu0 %v816
  %v852 = vpop.f32.mrb[0].mxu0
  %v853 = vadd.f32 0.0, %v852
  %v854 = vpop.f32.mrb[0].mxu0
  %v855 = vpop.f32.mrb[0].mxu0
  %v856 = vpop.f32.mrb[0].mxu0
  %857 = vdwg.mxu0
  %v858 = vadd.f32 %v810, %v853
  %v859 = vtanh.pop %v858
  %v860 = vxor.u32 %v858, 2147483648
  %v861 = vmul.f32 %v860, 1.442695
  %v862 = vpow.pop %v861
  %v863 = vadd.f32 %v862, 1.0
  %v864 = vrcp.pop %v863
  %v865 = vmul.f32 1.0, %v864
  %v866 = vsel %vm221, %v859, %v865
  %v867 = vmul.f32 %v866, %v798
  %869 = vrot.lane.b32.xlu0 %v866, 64
  %v870 = vpop.permute.xlu0 %869
  %v872 = vmul.f32 %v866, %v870
  %874 = vrot.lane.b32.xlu0 %v872, 32
  %v875 = vpop.permute.xlu0 %874
  %v877 = vadd.f32 %v867, %v875
  %v878 = vtanh.pop %v877
  %880 = vrot.lane.b32.xlu0 %v878, 64
  %v881 = vpop.permute.xlu0 %880
  %v883 = vmul.f32 %v866, %v881
  %885 = vrot.lane.b32.xlu0 %v883, 32
  %v886 = vpop.permute.xlu0 %885
  %888 = vst.msk [vmem:[#allocation3 + $0x30] sm:$0xff] %vm340, %v886
  %v889 = vld [vmem:[#allocation2 + $0x38] sm:$0xff]
  %v890 = vpack.c.bf16 %v883, %v883
  %892 = vrot.lane.b32.xlu0 %v890, 32
  %v893 = vpop.permute.xlu0 %892
  %v895 = vsel %vm340, %v893, 0
  %897 = vmatprep.subr.bf16.mxu0 0
  %898 = vmatpush1.bf16.msra.mxu0 %v336
  %899 = vmatprep.subr.bf16.mxu0 0
  %900 = vmatpush1.bf16.msra.mxu0 %v337
  %901 = vmatprep.subr.bf16.mxu0 0
  %902 = vmatpush1.bf16.msra.mxu0 0
  %903 = vmatprep.subr.bf16.mxu0 0
  %904 = vmatpush1.bf16.msra.mxu0 0
  %905 = vmatprep.subr.bf16.mxu0 0
  %906 = vmatpush1.bf16.msra.mxu0 0
  %907 = vmatprep.subr.bf16.mxu0 0
  %908 = vmatpush1.bf16.msra.mxu0 0
  %909 = vmatprep.subr.bf16.mxu0 0
  %910 = vmatpush1.bf16.msra.mxu0 0
  %911 = vmatprep.subr.bf16.mxu0 0
  %912 = vmatpush1.bf16.msra.mxu0 0
  %913 = vmatprep.subr.bf16.mxu0 0
  %914 = vmatpush1.bf16.msra.mxu0 0
  %915 = vmatprep.subr.bf16.mxu0 0
  %916 = vmatpush1.bf16.msra.mxu0 0
  %917 = vmatprep.subr.bf16.mxu0 0
  %918 = vmatpush1.bf16.msra.mxu0 0
  %919 = vmatprep.subr.bf16.mxu0 0
  %920 = vmatpush1.bf16.msra.mxu0 0
  %921 = vmatprep.subr.bf16.mxu0 0
  %922 = vmatpush1.bf16.msra.mxu0 0
  %923 = vmatprep.subr.bf16.mxu0 0
  %924 = vmatpush1.bf16.msra.mxu0 0
  %925 = vmatprep.subr.bf16.mxu0 0
  %926 = vmatpush1.bf16.msra.mxu0 0
  %927 = vmatprep.subr.bf16.mxu0 0
  %928 = vmatpush1.bf16.msra.mxu0 0
  %929 = vmatprep.mubr.bf16.mxu0 0
  %930 = vmatmul.mubr.bf16.gmra.mrb[0].mxu0 %v895
  %v931 = vpop.f32.mrb[0].mxu0
  %v932 = vadd.f32 0.0, %v931
  %v933 = vpop.f32.mrb[0].mxu0
  %v934 = vpop.f32.mrb[0].mxu0
  %v935 = vpop.f32.mrb[0].mxu0
  %936 = vdwg.mxu0
  %v937 = vadd.f32 %v889, %v932
  %v938 = vtanh.pop %v937
  %v939 = vxor.u32 %v937, 2147483648
  %v940 = vmul.f32 %v939, 1.442695
  %v941 = vpow.pop %v940
  %v942 = vadd.f32 %v941, 1.0
  %v943 = vrcp.pop %v942
  %v944 = vmul.f32 1.0, %v943
  %v945 = vsel %vm221, %v938, %v944
  %v946 = vmul.f32 %v945, %v877
  %948 = vrot.lane.b32.xlu0 %v945, 64
  %v949 = vpop.permute.xlu0 %948
  %v951 = vmul.f32 %v945, %v949
  %953 = vrot.lane.b32.xlu0 %v951, 32
  %v954 = vpop.permute.xlu0 %953
  %v956 = vadd.f32 %v946, %v954
  %v957 = vtanh.pop %v956
  %959 = vrot.lane.b32.xlu0 %v957, 64
  %v960 = vpop.permute.xlu0 %959
  %v962 = vmul.f32 %v945, %v960
  %964 = vrot.lane.b32.xlu0 %v962, 32
  %v965 = vpop.permute.xlu0 %964
  %967 = vst.msk [vmem:[#allocation3 + $0x38] sm:$0xff] %vm340, %v965
  %v968 = vld [vmem:[#allocation3] sm:$0xff]
  %v969 = vld [vmem:[#allocation3 + $0x8] sm:$0xff]
  %v970 = vld [vmem:[#allocation3 + $0x10] sm:$0xff]
  %v971 = vld [vmem:[#allocation3 + $0x18] sm:$0xff]
  %v972 = vld [vmem:[#allocation3 + $0x20] sm:$0xff]
  %v973 = vld [vmem:[#allocation3 + $0x28] sm:$0xff]
  %v974 = vld [vmem:[#allocation3 + $0x30] sm:$0xff]
  %v975 = vld [vmem:[#allocation3 + $0x38] sm:$0xff]
  %v976 = vpack.c.bf16 %v969, %v968
  %v977 = vpack.c.bf16 %v971, %v970
  %v978 = vpack.c.bf16 %v973, %v972
  %v979 = vpack.c.bf16 %v975, %v974
  %v980 = vld [vmem:[%s6] sm:$0xf]
  %v981 = vld [vmem:[%s6 + $0x4] sm:$0xf]
  %v982 = vld [vmem:[%s6 + $0x8] sm:$0xf]
  %v983 = vld [vmem:[%s6 + $0xc] sm:$0xf]
  %v984 = vld [vmem:[%s8] sm:$0x1]
  %v986 = vlaneseq
  %v987 = vshrl.u32 %v986, 7
  %v988 = vsub.s32 0, %v987
  %v989 = vrot.slane %v984, %v988
  %v995 = vunpack.c.l.b16 %v980
  %v996 = vunpack.c.l.b16 %v981
  %v997 = vunpack.c.l.b16 %v982
  %v998 = vunpack.c.l.b16 %v983
  %v999 = vpack.c.b16 %v996, %v995
  %v1000 = vpack.c.b16 %v998, %v997
  %v1004 = vsel %vm340, %v976, 0
  %v1007 = vsel %vm340, %v977, 0
  %v1010 = vsel %vm340, %v978, 0
  %v1013 = vsel %vm340, %v979, 0
  %1015 = vmatprep.subr.bf16.mxu0 0
  %1016 = vmatpush1.bf16.msra.mxu0 %v999
  %1017 = vmatprep.subr.bf16.mxu0 0
  %1018 = vmatpush1.bf16.msra.mxu0 %v1000
  %1019 = vmatprep.subr.bf16.mxu0 0
  %1020 = vmatpush1.bf16.msra.mxu0 0
  %1021 = vmatprep.subr.bf16.mxu0 0
  %1022 = vmatpush1.bf16.msra.mxu0 0
  %1023 = vmatprep.subr.bf16.mxu0 0
  %1024 = vmatpush1.bf16.msra.mxu0 0
  %1025 = vmatprep.subr.bf16.mxu0 0
  %1026 = vmatpush1.bf16.msra.mxu0 0
  %1027 = vmatprep.subr.bf16.mxu0 0
  %1028 = vmatpush1.bf16.msra.mxu0 0
  %1029 = vmatprep.subr.bf16.mxu0 0
  %1030 = vmatpush1.bf16.msra.mxu0 0
  %1031 = vmatprep.subr.bf16.mxu0 0
  %1032 = vmatpush1.bf16.msra.mxu0 0
  %1033 = vmatprep.subr.bf16.mxu0 0
  %1034 = vmatpush1.bf16.msra.mxu0 0
  %1035 = vmatprep.subr.bf16.mxu0 0
  %1036 = vmatpush1.bf16.msra.mxu0 0
  %1037 = vmatprep.subr.bf16.mxu0 0
  %1038 = vmatpush1.bf16.msra.mxu0 0
  %1039 = vmatprep.subr.bf16.mxu0 0
  %1040 = vmatpush1.bf16.msra.mxu0 0
  %1041 = vmatprep.subr.bf16.mxu0 0
  %1042 = vmatpush1.bf16.msra.mxu0 0
  %1043 = vmatprep.subr.bf16.mxu0 0
  %1044 = vmatpush1.bf16.msra.mxu0 0
  %1045 = vmatprep.subr.bf16.mxu0 0
  %1046 = vmatpush1.bf16.msra.mxu0 0
  %1047 = vmatprep.mubr.bf16.mxu0 0
  %1048 = vmatmul.mubr.bf16.gmra.mrb[0].mxu0 %v1004
  %v1049 = vpop.f32.mrb[0].mxu0
  %v1050 = vadd.f32 %v989, %v1049
  %v1051 = vpop.f32.mrb[0].mxu0
  %v1052 = vpop.f32.mrb[0].mxu0
  %v1053 = vadd.f32 %v989, %v1052
  %v1054 = vpop.f32.mrb[0].mxu0
  %1055 = vmatprep.mubr.bf16.mxu0 0
  %1056 = vmatmul.mubr.bf16.gmra.mrb[0].mxu0 %v1007
  %v1057 = vpop.f32.mrb[0].mxu0
  %v1058 = vadd.f32 %v989, %v1057
  %v1059 = vpop.f32.mrb[0].mxu0
  %v1060 = vpop.f32.mrb[0].mxu0
  %v1061 = vadd.f32 %v989, %v1060
  %v1062 = vpop.f32.mrb[0].mxu0
  %1063 = vmatprep.mubr.bf16.mxu0 0
  %1064 = vmatmul.mubr.bf16.gmra.mrb[0].mxu0 %v1010
  %v1065 = vpop.f32.mrb[0].mxu0
  %v1066 = vadd.f32 %v989, %v1065
  %v1067 = vpop.f32.mrb[0].mxu0
  %v1068 = vpop.f32.mrb[0].mxu0
  %v1069 = vadd.f32 %v989, %v1068
  %v1070 = vpop.f32.mrb[0].mxu0
  %1071 = vmatprep.mubr.bf16.mxu0 0
  %1072 = vmatmul.mubr.bf16.gmra.mrb[0].mxu0 %v1013
  %v1073 = vpop.f32.mrb[0].mxu0
  %v1074 = vadd.f32 %v989, %v1073
  %v1075 = vpop.f32.mrb[0].mxu0
  %v1076 = vpop.f32.mrb[0].mxu0
  %v1077 = vadd.f32 %v989, %v1076
  %v1078 = vpop.f32.mrb[0].mxu0
  %1079 = vdwg.mxu0
  %1080 = vst [vmem:[#allocation2] sm:$0xff] %v1050
  %1081 = vst [vmem:[#allocation2 + $0x8] sm:$0xff] %v1053
  %1082 = vst [vmem:[#allocation2 + $0x10] sm:$0xff] %v1058
  %1083 = vst [vmem:[#allocation2 + $0x18] sm:$0xff] %v1061
  %1084 = vst [vmem:[#allocation2 + $0x20] sm:$0xff] %v1066
  %1085 = vst [vmem:[#allocation2 + $0x28] sm:$0xff] %v1069
  %1086 = vst [vmem:[#allocation2 + $0x30] sm:$0xff] %v1074
  %1087 = vst [vmem:[#allocation2 + $0x38] sm:$0xff] %v1077
  %v1088 = vld [vmem:[%s7] sm:$0xf]
  %v1089 = vld [vmem:[%s7 + $0x4] sm:$0xf]
  %v1090 = vld [vmem:[%s7 + $0x8] sm:$0xf]
  %v1091 = vld [vmem:[%s7 + $0xc] sm:$0xf]
  %v1092 = vld [vmem:[#allocation2] sm:$0xff]
  %v1097 = vunpack.c.l.b16 %v1088
  %v1098 = vunpack.c.l.b16 %v1089
  %v1099 = vunpack.c.l.b16 %v1090
  %v1100 = vunpack.c.l.b16 %v1091
  %v1101 = vpack.c.b16 %v1098, %v1097
  %v1102 = vpack.c.b16 %v1100, %v1099
  %1105 = vmatprep.subr.bf16.mxu0 0
  %1106 = vmatpush1.bf16.msra.mxu0 %v1101
  %1107 = vmatprep.subr.bf16.mxu0 0
  %1108 = vmatpush1.bf16.msra.mxu0 %v1102
  %1109 = vmatprep.subr.bf16.mxu0 0
  %1110 = vmatpush1.bf16.msra.mxu0 0
  %1111 = vmatprep.subr.bf16.mxu0 0
  %1112 = vmatpush1.bf16.msra.mxu0 0
  %1113 = vmatprep.subr.bf16.mxu0 0
  %1114 = vmatpush1.bf16.msra.mxu0 0
  %1115 = vmatprep.subr.bf16.mxu0 0
  %1116 = vmatpush1.bf16.msra.mxu0 0
  %1117 = vmatprep.subr.bf16.mxu0 0
  %1118 = vmatpush1.bf16.msra.mxu0 0
  %1119 = vmatprep.subr.bf16.mxu0 0
  %1120 = vmatpush1.bf16.msra.mxu0 0
  %1121 = vmatprep.subr.bf16.mxu0 0
  %1122 = vmatpush1.bf16.msra.mxu0 0
  %1123 = vmatprep.subr.bf16.mxu0 0
  %1124 = vmatpush1.bf16.msra.mxu0 0
  %1125 = vmatprep.subr.bf16.mxu0 0
  %1126 = vmatpush1.bf16.msra.mxu0 0
  %1127 = vmatprep.subr.bf16.mxu0 0
  %1128 = vmatpush1.bf16.msra.mxu0 0
  %1129 = vmatprep.subr.bf16.mxu0 0
  %1130 = vmatpush1.bf16.msra.mxu0 0
  %1131 = vmatprep.subr.bf16.mxu0 0
  %1132 = vmatpush1.bf16.msra.mxu0 0
  %1133 = vmatprep.subr.bf16.mxu0 0
  %1134 = vmatpush1.bf16.msra.mxu0 0
  %1135 = vmatprep.subr.bf16.mxu0 0
  %1136 = vmatpush1.bf16.msra.mxu0 0
  %1137 = vmatprep.mubr.bf16.mxu0 0
  %1138 = vmatmul.mubr.bf16.gmra.mrb[0].mxu0 %v342
  %v1139 = vpop.f32.mrb[0].mxu0
  %v1140 = vadd.f32 0.0, %v1139
  %v1141 = vpop.f32.mrb[0].mxu0
  %v1142 = vpop.f32.mrb[0].mxu0
  %v1143 = vpop.f32.mrb[0].mxu0
  %1144 = vdwg.mxu0
  %v1145 = vadd.f32 %v1092, %v1140
  %v1146 = vtanh.pop %v1145
  %v1147 = vxor.u32 %v1145, 2147483648
  %v1148 = vmul.f32 %v1147, 1.442695
  %v1149 = vpow.pop %v1148
  %v1150 = vadd.f32 %v1149, 1.0
  %v1151 = vrcp.pop %v1150
  %v1152 = vmul.f32 1.0, %v1151
  %v1153 = vsel %vm221, %v1146, %v1152
  %v1154 = vmul.f32 %v1153, 0.0
  %1156 = vrot.lane.b32.xlu0 %v1153, 64
  %v1157 = vpop.permute.xlu0 %1156
  %v1159 = vmul.f32 %v1153, %v1157
  %1161 = vrot.lane.b32.xlu0 %v1159, 32
  %v1162 = vpop.permute.xlu0 %1161
  %v1164 = vadd.f32 %v1154, %v1162
  %v1165 = vtanh.pop %v1164
  %1167 = vrot.lane.b32.xlu0 %v1165, 64
  %v1168 = vpop.permute.xlu0 %1167
  %v1170 = vmul.f32 %v1153, %v1168
  %vm1171 = vcmp.eq.s32.totalorder %v218, 1
  %v1172 = vsel %vm1171, %v1170, 0.0
  %v1173 = vld [vmem:[#allocation2 + $0x8] sm:$0xff]
  %v1174 = vpack.c.bf16 %v1170, %v1170
  %1176 = vrot.lane.b32.xlu0 %v1174, 32
  %v1177 = vpop.permute.xlu0 %1176
  %v1179 = vsel %vm340, %v1177, 0
  %1181 = vmatprep.subr.bf16.mxu0 0
  %1182 = vmatpush1.bf16.msra.mxu0 %v1101
  %1183 = vmatprep.subr.bf16.mxu0 0
  %1184 = vmatpush1.bf16.msra.mxu0 %v1102
  %1185 = vmatprep.subr.bf16.mxu0 0
  %1186 = vmatpush1.bf16.msra.mxu0 0
  %1187 = vmatprep.subr.bf16.mxu0 0
  %1188 = vmatpush1.bf16.msra.mxu0 0
  %1189 = vmatprep.subr.bf16.mxu0 0
  %1190 = vmatpush1.bf16.msra.mxu0 0
  %1191 = vmatprep.subr.bf16.mxu0 0
  %1192 = vmatpush1.bf16.msra.mxu0 0
  %1193 = vmatprep.subr.bf16.mxu0 0
  %1194 = vmatpush1.bf16.msra.mxu0 0
  %1195 = vmatprep.subr.bf16.mxu0 0
  %1196 = vmatpush1.bf16.msra.mxu0 0
  %1197 = vmatprep.subr.bf16.mxu0 0
  %1198 = vmatpush1.bf16.msra.mxu0 0
  %1199 = vmatprep.subr.bf16.mxu0 0
  %1200 = vmatpush1.bf16.msra.mxu0 0
  %1201 = vmatprep.subr.bf16.mxu0 0
  %1202 = vmatpush1.bf16.msra.mxu0 0
  %1203 = vmatprep.subr.bf16.mxu0 0
  %1204 = vmatpush1.bf16.msra.mxu0 0
  %1205 = vmatprep.subr.bf16.mxu0 0
  %1206 = vmatpush1.bf16.msra.mxu0 0
  %1207 = vmatprep.subr.bf16.mxu0 0
  %1208 = vmatpush1.bf16.msra.mxu0 0
  %1209 = vmatprep.subr.bf16.mxu0 0
  %1210 = vmatpush1.bf16.msra.mxu0 0
  %1211 = vmatprep.subr.bf16.mxu0 0
  %1212 = vmatpush1.bf16.msra.mxu0 0
  %1213 = vmatprep.mubr.bf16.mxu0 0
  %1214 = vmatmul.mubr.bf16.gmra.mrb[0].mxu0 %v1179
  %v1215 = vpop.f32.mrb[0].mxu0
  %v1216 = vadd.f32 0.0, %v1215
  %v1217 = vpop.f32.mrb[0].mxu0
  %v1218 = vpop.f32.mrb[0].mxu0
  %v1219 = vpop.f32.mrb[0].mxu0
  %1220 = vdwg.mxu0
  %v1221 = vadd.f32 %v1173, %v1216
  %v1222 = vtanh.pop %v1221
  %v1223 = vxor.u32 %v1221, 2147483648
  %v1224 = vmul.f32 %v1223, 1.442695
  %v1225 = vpow.pop %v1224
  %v1226 = vadd.f32 %v1225, 1.0
  %v1227 = vrcp.pop %v1226
  %v1228 = vmul.f32 1.0, %v1227
  %v1229 = vsel %vm221, %v1222, %v1228
  %v1230 = vmul.f32 %v1229, %v1164
  %1232 = vrot.lane.b32.xlu0 %v1229, 64
  %v1233 = vpop.permute.xlu0 %1232
  %v1235 = vmul.f32 %v1229, %v1233
  %1237 = vrot.lane.b32.xlu0 %v1235, 32
  %v1238 = vpop.permute.xlu0 %1237
  %v1240 = vadd.f32 %v1230, %v1238
  %v1241 = vtanh.pop %v1240
  %1243 = vrot.lane.b32.xlu0 %v1241, 64
  %v1244 = vpop.permute.xlu0 %1243
  %v1246 = vmul.f32 %v1229, %v1244
  %vm1247 = vcmp.eq.s32.totalorder %v218, 2
  %v1248 = vsel %vm1247, %v1246, %v1172
  %v1249 = vld [vmem:[#allocation2 + $0x10] sm:$0xff]
  %v1250 = vpack.c.bf16 %v1246, %v1246
  %1252 = vrot.lane.b32.xlu0 %v1250, 32
  %v1253 = vpop.permute.xlu0 %1252
  %v1255 = vsel %vm340, %v1253, 0
  %1257 = vmatprep.subr.bf16.mxu0 0
  %1258 = vmatpush1.bf16.msra.mxu0 %v1101
  %1259 = vmatprep.subr.bf16.mxu0 0
  %1260 = vmatpush1.bf16.msra.mxu0 %v1102
  %1261 = vmatprep.subr.bf16.mxu0 0
  %1262 = vmatpush1.bf16.msra.mxu0 0
  %1263 = vmatprep.subr.bf16.mxu0 0
  %1264 = vmatpush1.bf16.msra.mxu0 0
  %1265 = vmatprep.subr.bf16.mxu0 0
  %1266 = vmatpush1.bf16.msra.mxu0 0
  %1267 = vmatprep.subr.bf16.mxu0 0
  %1268 = vmatpush1.bf16.msra.mxu0 0
  %1269 = vmatprep.subr.bf16.mxu0 0
  %1270 = vmatpush1.bf16.msra.mxu0 0
  %1271 = vmatprep.subr.bf16.mxu0 0
  %1272 = vmatpush1.bf16.msra.mxu0 0
  %1273 = vmatprep.subr.bf16.mxu0 0
  %1274 = vmatpush1.bf16.msra.mxu0 0
  %1275 = vmatprep.subr.bf16.mxu0 0
  %1276 = vmatpush1.bf16.msra.mxu0 0
  %1277 = vmatprep.subr.bf16.mxu0 0
  %1278 = vmatpush1.bf16.msra.mxu0 0
  %1279 = vmatprep.subr.bf16.mxu0 0
  %1280 = vmatpush1.bf16.msra.mxu0 0
  %1281 = vmatprep.subr.bf16.mxu0 0
  %1282 = vmatpush1.bf16.msra.mxu0 0
  %1283 = vmatprep.subr.bf16.mxu0 0
  %1284 = vmatpush1.bf16.msra.mxu0 0
  %1285 = vmatprep.subr.bf16.mxu0 0
  %1286 = vmatpush1.bf16.msra.mxu0 0
  %1287 = vmatprep.subr.bf16.mxu0 0
  %1288 = vmatpush1.bf16.msra.mxu0 0
  %1289 = vmatprep.mubr.bf16.mxu0 0
  %1290 = vmatmul.mubr.bf16.gmra.mrb[0].mxu0 %v1255
  %v1291 = vpop.f32.mrb[0].mxu0
  %v1292 = vadd.f32 0.0, %v1291
  %v1293 = vpop.f32.mrb[0].mxu0
  %v1294 = vpop.f32.mrb[0].mxu0
  %v1295 = vpop.f32.mrb[0].mxu0
  %1296 = vdwg.mxu0
  %v1297 = vadd.f32 %v1249, %v1292
  %v1298 = vtanh.pop %v1297
  %v1299 = vxor.u32 %v1297, 2147483648
  %v1300 = vmul.f32 %v1299, 1.442695
  %v1301 = vpow.pop %v1300
  %v1302 = vadd.f32 %v1301, 1.0
  %v1303 = vrcp.pop %v1302
  %v1304 = vmul.f32 1.0, %v1303
  %v1305 = vsel %vm221, %v1298, %v1304
  %v1306 = vmul.f32 %v1305, %v1240
  %1308 = vrot.lane.b32.xlu0 %v1305, 64
  %v1309 = vpop.permute.xlu0 %1308
  %v1311 = vmul.f32 %v1305, %v1309
  %1313 = vrot.lane.b32.xlu0 %v1311, 32
  %v1314 = vpop.permute.xlu0 %1313
  %v1316 = vadd.f32 %v1306, %v1314
  %v1317 = vtanh.pop %v1316
  %1319 = vrot.lane.b32.xlu0 %v1317, 64
  %v1320 = vpop.permute.xlu0 %1319
  %v1322 = vmul.f32 %v1305, %v1320
  %vm1323 = vcmp.eq.s32.totalorder %v218, 3
  %v1324 = vsel %vm1323, %v1322, %v1248
  %v1325 = vld [vmem:[#allocation2 + $0x18] sm:$0xff]
  %v1326 = vpack.c.bf16 %v1322, %v1322
  %1328 = vrot.lane.b32.xlu0 %v1326, 32
  %v1329 = vpop.permute.xlu0 %1328
  %v1331 = vsel %vm340, %v1329, 0
  %1333 = vmatprep.subr.bf16.mxu0 0
  %1334 = vmatpush1.bf16.msra.mxu0 %v1101
  %1335 = vmatprep.subr.bf16.mxu0 0
  %1336 = vmatpush1.bf16.msra.mxu0 %v1102
  %1337 = vmatprep.subr.bf16.mxu0 0
  %1338 = vmatpush1.bf16.msra.mxu0 0
  %1339 = vmatprep.subr.bf16.mxu0 0
  %1340 = vmatpush1.bf16.msra.mxu0 0
  %1341 = vmatprep.subr.bf16.mxu0 0
  %1342 = vmatpush1.bf16.msra.mxu0 0
  %1343 = vmatprep.subr.bf16.mxu0 0
  %1344 = vmatpush1.bf16.msra.mxu0 0
  %1345 = vmatprep.subr.bf16.mxu0 0
  %1346 = vmatpush1.bf16.msra.mxu0 0
  %1347 = vmatprep.subr.bf16.mxu0 0
  %1348 = vmatpush1.bf16.msra.mxu0 0
  %1349 = vmatprep.subr.bf16.mxu0 0
  %1350 = vmatpush1.bf16.msra.mxu0 0
  %1351 = vmatprep.subr.bf16.mxu0 0
  %1352 = vmatpush1.bf16.msra.mxu0 0
  %1353 = vmatprep.subr.bf16.mxu0 0
  %1354 = vmatpush1.bf16.msra.mxu0 0
  %1355 = vmatprep.subr.bf16.mxu0 0
  %1356 = vmatpush1.bf16.msra.mxu0 0
  %1357 = vmatprep.subr.bf16.mxu0 0
  %1358 = vmatpush1.bf16.msra.mxu0 0
  %1359 = vmatprep.subr.bf16.mxu0 0
  %1360 = vmatpush1.bf16.msra.mxu0 0
  %1361 = vmatprep.subr.bf16.mxu0 0
  %1362 = vmatpush1.bf16.msra.mxu0 0
  %1363 = vmatprep.subr.bf16.mxu0 0
  %1364 = vmatpush1.bf16.msra.mxu0 0
  %1365 = vmatprep.mubr.bf16.mxu0 0
  %1366 = vmatmul.mubr.bf16.gmra.mrb[0].mxu0 %v1331
  %v1367 = vpop.f32.mrb[0].mxu0
  %v1368 = vadd.f32 0.0, %v1367
  %v1369 = vpop.f32.mrb[0].mxu0
  %v1370 = vpop.f32.mrb[0].mxu0
  %v1371 = vpop.f32.mrb[0].mxu0
  %1372 = vdwg.mxu0
  %v1373 = vadd.f32 %v1325, %v1368
  %v1374 = vtanh.pop %v1373
  %v1375 = vxor.u32 %v1373, 2147483648
  %v1376 = vmul.f32 %v1375, 1.442695
  %v1377 = vpow.pop %v1376
  %v1378 = vadd.f32 %v1377, 1.0
  %v1379 = vrcp.pop %v1378
  %v1380 = vmul.f32 1.0, %v1379
  %v1381 = vsel %vm221, %v1374, %v1380
  %v1382 = vmul.f32 %v1381, %v1316
  %1384 = vrot.lane.b32.xlu0 %v1381, 64
  %v1385 = vpop.permute.xlu0 %1384
  %v1387 = vmul.f32 %v1381, %v1385
  %1389 = vrot.lane.b32.xlu0 %v1387, 32
  %v1390 = vpop.permute.xlu0 %1389
  %v1392 = vadd.f32 %v1382, %v1390
  %v1393 = vtanh.pop %v1392
  %1395 = vrot.lane.b32.xlu0 %v1393, 64
  %v1396 = vpop.permute.xlu0 %1395
  %v1398 = vmul.f32 %v1381, %v1396
  %vm1399 = vcmp.eq.s32.totalorder %v218, 4
  %v1400 = vsel %vm1399, %v1398, %v1324
  %v1401 = vld [vmem:[#allocation2 + $0x20] sm:$0xff]
  %v1402 = vpack.c.bf16 %v1398, %v1398
  %1404 = vrot.lane.b32.xlu0 %v1402, 32
  %v1405 = vpop.permute.xlu0 %1404
  %v1407 = vsel %vm340, %v1405, 0
  %1409 = vmatprep.subr.bf16.mxu0 0
  %1410 = vmatpush1.bf16.msra.mxu0 %v1101
  %1411 = vmatprep.subr.bf16.mxu0 0
  %1412 = vmatpush1.bf16.msra.mxu0 %v1102
  %1413 = vmatprep.subr.bf16.mxu0 0
  %1414 = vmatpush1.bf16.msra.mxu0 0
  %1415 = vmatprep.subr.bf16.mxu0 0
  %1416 = vmatpush1.bf16.msra.mxu0 0
  %1417 = vmatprep.subr.bf16.mxu0 0
  %1418 = vmatpush1.bf16.msra.mxu0 0
  %1419 = vmatprep.subr.bf16.mxu0 0
  %1420 = vmatpush1.bf16.msra.mxu0 0
  %1421 = vmatprep.subr.bf16.mxu0 0
  %1422 = vmatpush1.bf16.msra.mxu0 0
  %1423 = vmatprep.subr.bf16.mxu0 0
  %1424 = vmatpush1.bf16.msra.mxu0 0
  %1425 = vmatprep.subr.bf16.mxu0 0
  %1426 = vmatpush1.bf16.msra.mxu0 0
  %1427 = vmatprep.subr.bf16.mxu0 0
  %1428 = vmatpush1.bf16.msra.mxu0 0
  %1429 = vmatprep.subr.bf16.mxu0 0
  %1430 = vmatpush1.bf16.msra.mxu0 0
  %1431 = vmatprep.subr.bf16.mxu0 0
  %1432 = vmatpush1.bf16.msra.mxu0 0
  %1433 = vmatprep.subr.bf16.mxu0 0
  %1434 = vmatpush1.bf16.msra.mxu0 0
  %1435 = vmatprep.subr.bf16.mxu0 0
  %1436 = vmatpush1.bf16.msra.mxu0 0
  %1437 = vmatprep.subr.bf16.mxu0 0
  %1438 = vmatpush1.bf16.msra.mxu0 0
  %1439 = vmatprep.subr.bf16.mxu0 0
  %1440 = vmatpush1.bf16.msra.mxu0 0
  %1441 = vmatprep.mubr.bf16.mxu0 0
  %1442 = vmatmul.mubr.bf16.gmra.mrb[0].mxu0 %v1407
  %v1443 = vpop.f32.mrb[0].mxu0
  %v1444 = vadd.f32 0.0, %v1443
  %v1445 = vpop.f32.mrb[0].mxu0
  %v1446 = vpop.f32.mrb[0].mxu0
  %v1447 = vpop.f32.mrb[0].mxu0
  %1448 = vdwg.mxu0
  %v1449 = vadd.f32 %v1401, %v1444
  %v1450 = vtanh.pop %v1449
  %v1451 = vxor.u32 %v1449, 2147483648
  %v1452 = vmul.f32 %v1451, 1.442695
  %v1453 = vpow.pop %v1452
  %v1454 = vadd.f32 %v1453, 1.0
  %v1455 = vrcp.pop %v1454
  %v1456 = vmul.f32 1.0, %v1455
  %v1457 = vsel %vm221, %v1450, %v1456
  %v1458 = vmul.f32 %v1457, %v1392
  %1460 = vrot.lane.b32.xlu0 %v1457, 64
  %v1461 = vpop.permute.xlu0 %1460
  %v1463 = vmul.f32 %v1457, %v1461
  %1465 = vrot.lane.b32.xlu0 %v1463, 32
  %v1466 = vpop.permute.xlu0 %1465
  %v1468 = vadd.f32 %v1458, %v1466
  %v1469 = vtanh.pop %v1468
  %1471 = vrot.lane.b32.xlu0 %v1469, 64
  %v1472 = vpop.permute.xlu0 %1471
  %v1474 = vmul.f32 %v1457, %v1472
  %vm1475 = vcmp.eq.s32.totalorder %v218, 5
  %v1476 = vsel %vm1475, %v1474, %v1400
  %v1477 = vld [vmem:[#allocation2 + $0x28] sm:$0xff]
  %v1478 = vpack.c.bf16 %v1474, %v1474
  %1480 = vrot.lane.b32.xlu0 %v1478, 32
  %v1481 = vpop.permute.xlu0 %1480
  %v1483 = vsel %vm340, %v1481, 0
  %1485 = vmatprep.subr.bf16.mxu0 0
  %1486 = vmatpush1.bf16.msra.mxu0 %v1101
  %1487 = vmatprep.subr.bf16.mxu0 0
  %1488 = vmatpush1.bf16.msra.mxu0 %v1102
  %1489 = vmatprep.subr.bf16.mxu0 0
  %1490 = vmatpush1.bf16.msra.mxu0 0
  %1491 = vmatprep.subr.bf16.mxu0 0
  %1492 = vmatpush1.bf16.msra.mxu0 0
  %1493 = vmatprep.subr.bf16.mxu0 0
  %1494 = vmatpush1.bf16.msra.mxu0 0
  %1495 = vmatprep.subr.bf16.mxu0 0
  %1496 = vmatpush1.bf16.msra.mxu0 0
  %1497 = vmatprep.subr.bf16.mxu0 0
  %1498 = vmatpush1.bf16.msra.mxu0 0
  %1499 = vmatprep.subr.bf16.mxu0 0
  %1500 = vmatpush1.bf16.msra.mxu0 0
  %1501 = vmatprep.subr.bf16.mxu0 0
  %1502 = vmatpush1.bf16.msra.mxu0 0
  %1503 = vmatprep.subr.bf16.mxu0 0
  %1504 = vmatpush1.bf16.msra.mxu0 0
  %1505 = vmatprep.subr.bf16.mxu0 0
  %1506 = vmatpush1.bf16.msra.mxu0 0
  %1507 = vmatprep.subr.bf16.mxu0 0
  %1508 = vmatpush1.bf16.msra.mxu0 0
  %1509 = vmatprep.subr.bf16.mxu0 0
  %1510 = vmatpush1.bf16.msra.mxu0 0
  %1511 = vmatprep.subr.bf16.mxu0 0
  %1512 = vmatpush1.bf16.msra.mxu0 0
  %1513 = vmatprep.subr.bf16.mxu0 0
  %1514 = vmatpush1.bf16.msra.mxu0 0
  %1515 = vmatprep.subr.bf16.mxu0 0
  %1516 = vmatpush1.bf16.msra.mxu0 0
  %1517 = vmatprep.mubr.bf16.mxu0 0
  %1518 = vmatmul.mubr.bf16.gmra.mrb[0].mxu0 %v1483
  %v1519 = vpop.f32.mrb[0].mxu0
  %v1520 = vadd.f32 0.0, %v1519
  %v1521 = vpop.f32.mrb[0].mxu0
  %v1522 = vpop.f32.mrb[0].mxu0
  %v1523 = vpop.f32.mrb[0].mxu0
  %1524 = vdwg.mxu0
  %v1525 = vadd.f32 %v1477, %v1520
  %v1526 = vtanh.pop %v1525
  %v1527 = vxor.u32 %v1525, 2147483648
  %v1528 = vmul.f32 %v1527, 1.442695
  %v1529 = vpow.pop %v1528
  %v1530 = vadd.f32 %v1529, 1.0
  %v1531 = vrcp.pop %v1530
  %v1532 = vmul.f32 1.0, %v1531
  %v1533 = vsel %vm221, %v1526, %v1532
  %v1534 = vmul.f32 %v1533, %v1468
  %1536 = vrot.lane.b32.xlu0 %v1533, 64
  %v1537 = vpop.permute.xlu0 %1536
  %v1539 = vmul.f32 %v1533, %v1537
  %1541 = vrot.lane.b32.xlu0 %v1539, 32
  %v1542 = vpop.permute.xlu0 %1541
  %v1544 = vadd.f32 %v1534, %v1542
  %v1545 = vtanh.pop %v1544
  %1547 = vrot.lane.b32.xlu0 %v1545, 64
  %v1548 = vpop.permute.xlu0 %1547
  %v1550 = vmul.f32 %v1533, %v1548
  %vm1551 = vcmp.eq.s32.totalorder %v218, 6
  %v1552 = vsel %vm1551, %v1550, %v1476
  %v1553 = vld [vmem:[#allocation2 + $0x30] sm:$0xff]
  %v1554 = vpack.c.bf16 %v1550, %v1550
  %1556 = vrot.lane.b32.xlu0 %v1554, 32
  %v1557 = vpop.permute.xlu0 %1556
  %v1559 = vsel %vm340, %v1557, 0
  %1561 = vmatprep.subr.bf16.mxu0 0
  %1562 = vmatpush1.bf16.msra.mxu0 %v1101
  %1563 = vmatprep.subr.bf16.mxu0 0
  %1564 = vmatpush1.bf16.msra.mxu0 %v1102
  %1565 = vmatprep.subr.bf16.mxu0 0
  %1566 = vmatpush1.bf16.msra.mxu0 0
  %1567 = vmatprep.subr.bf16.mxu0 0
  %1568 = vmatpush1.bf16.msra.mxu0 0
  %1569 = vmatprep.subr.bf16.mxu0 0
  %1570 = vmatpush1.bf16.msra.mxu0 0
  %1571 = vmatprep.subr.bf16.mxu0 0
  %1572 = vmatpush1.bf16.msra.mxu0 0
  %1573 = vmatprep.subr.bf16.mxu0 0
  %1574 = vmatpush1.bf16.msra.mxu0 0
  %1575 = vmatprep.subr.bf16.mxu0 0
  %1576 = vmatpush1.bf16.msra.mxu0 0
  %1577 = vmatprep.subr.bf16.mxu0 0
  %1578 = vmatpush1.bf16.msra.mxu0 0
  %1579 = vmatprep.subr.bf16.mxu0 0
  %1580 = vmatpush1.bf16.msra.mxu0 0
  %1581 = vmatprep.subr.bf16.mxu0 0
  %1582 = vmatpush1.bf16.msra.mxu0 0
  %1583 = vmatprep.subr.bf16.mxu0 0
  %1584 = vmatpush1.bf16.msra.mxu0 0
  %1585 = vmatprep.subr.bf16.mxu0 0
  %1586 = vmatpush1.bf16.msra.mxu0 0
  %1587 = vmatprep.subr.bf16.mxu0 0
  %1588 = vmatpush1.bf16.msra.mxu0 0
  %1589 = vmatprep.subr.bf16.mxu0 0
  %1590 = vmatpush1.bf16.msra.mxu0 0
  %1591 = vmatprep.subr.bf16.mxu0 0
  %1592 = vmatpush1.bf16.msra.mxu0 0
  %1593 = vmatprep.mubr.bf16.mxu0 0
  %1594 = vmatmul.mubr.bf16.gmra.mrb[0].mxu0 %v1559
  %v1595 = vpop.f32.mrb[0].mxu0
  %v1596 = vadd.f32 0.0, %v1595
  %v1597 = vpop.f32.mrb[0].mxu0
  %v1598 = vpop.f32.mrb[0].mxu0
  %v1599 = vpop.f32.mrb[0].mxu0
  %1600 = vdwg.mxu0
  %v1601 = vadd.f32 %v1553, %v1596
  %v1602 = vtanh.pop %v1601
  %v1603 = vxor.u32 %v1601, 2147483648
  %v1604 = vmul.f32 %v1603, 1.442695
  %v1605 = vpow.pop %v1604
  %v1606 = vadd.f32 %v1605, 1.0
  %v1607 = vrcp.pop %v1606
  %v1608 = vmul.f32 1.0, %v1607
  %v1609 = vsel %vm221, %v1602, %v1608
  %v1610 = vmul.f32 %v1609, %v1544
  %1612 = vrot.lane.b32.xlu0 %v1609, 64
  %v1613 = vpop.permute.xlu0 %1612
  %v1615 = vmul.f32 %v1609, %v1613
  %1617 = vrot.lane.b32.xlu0 %v1615, 32
  %v1618 = vpop.permute.xlu0 %1617
  %v1620 = vadd.f32 %v1610, %v1618
  %v1621 = vtanh.pop %v1620
  %1623 = vrot.lane.b32.xlu0 %v1621, 64
  %v1624 = vpop.permute.xlu0 %1623
  %v1626 = vmul.f32 %v1609, %v1624
  %vm1627 = vcmp.eq.s32.totalorder %v218, 7
  %v1628 = vsel %vm1627, %v1626, %v1552
  %v1629 = vld [vmem:[#allocation2 + $0x38] sm:$0xff]
  %v1630 = vpack.c.bf16 %v1626, %v1626
  %1632 = vrot.lane.b32.xlu0 %v1630, 32
  %v1633 = vpop.permute.xlu0 %1632
  %v1635 = vsel %vm340, %v1633, 0
  %1637 = vmatprep.subr.bf16.mxu0 0
  %1638 = vmatpush1.bf16.msra.mxu0 %v1101
  %1639 = vmatprep.subr.bf16.mxu0 0
  %1640 = vmatpush1.bf16.msra.mxu0 %v1102
  %1641 = vmatprep.subr.bf16.mxu0 0
  %1642 = vmatpush1.bf16.msra.mxu0 0
  %1643 = vmatprep.subr.bf16.mxu0 0
  %1644 = vmatpush1.bf16.msra.mxu0 0
  %1645 = vmatprep.subr.bf16.mxu0 0
  %1646 = vmatpush1.bf16.msra.mxu0 0
  %1647 = vmatprep.subr.bf16.mxu0 0
  %1648 = vmatpush1.bf16.msra.mxu0 0
  %1649 = vmatprep.subr.bf16.mxu0 0
  %1650 = vmatpush1.bf16.msra.mxu0 0
  %1651 = vmatprep.subr.bf16.mxu0 0
  %1652 = vmatpush1.bf16.msra.mxu0 0
  %1653 = vmatprep.subr.bf16.mxu0 0
  %1654 = vmatpush1.bf16.msra.mxu0 0
  %1655 = vmatprep.subr.bf16.mxu0 0
  %1656 = vmatpush1.bf16.msra.mxu0 0
  %1657 = vmatprep.subr.bf16.mxu0 0
  %1658 = vmatpush1.bf16.msra.mxu0 0
  %1659 = vmatprep.subr.bf16.mxu0 0
  %1660 = vmatpush1.bf16.msra.mxu0 0
  %1661 = vmatprep.subr.bf16.mxu0 0
  %1662 = vmatpush1.bf16.msra.mxu0 0
  %1663 = vmatprep.subr.bf16.mxu0 0
  %1664 = vmatpush1.bf16.msra.mxu0 0
  %1665 = vmatprep.subr.bf16.mxu0 0
  %1666 = vmatpush1.bf16.msra.mxu0 0
  %1667 = vmatprep.subr.bf16.mxu0 0
  %1668 = vmatpush1.bf16.msra.mxu0 0
  %1669 = vmatprep.mubr.bf16.mxu0 0
  %1670 = vmatmul.mubr.bf16.gmra.mrb[0].mxu0 %v1635
  %v1671 = vpop.f32.mrb[0].mxu0
  %v1672 = vadd.f32 0.0, %v1671
  %v1673 = vpop.f32.mrb[0].mxu0
  %v1674 = vpop.f32.mrb[0].mxu0
  %v1675 = vpop.f32.mrb[0].mxu0
  %1676 = vdwg.mxu0
  %v1677 = vadd.f32 %v1629, %v1672
  %v1678 = vtanh.pop %v1677
  %v1679 = vxor.u32 %v1677, 2147483648
  %v1680 = vmul.f32 %v1679, 1.442695
  %v1681 = vpow.pop %v1680
  %v1682 = vadd.f32 %v1681, 1.0
  %v1683 = vrcp.pop %v1682
  %v1684 = vmul.f32 1.0, %v1683
  %v1685 = vsel %vm221, %v1678, %v1684
  %v1686 = vmul.f32 %v1685, %v1620
  %1688 = vrot.lane.b32.xlu0 %v1685, 64
  %v1689 = vpop.permute.xlu0 %1688
  %v1691 = vmul.f32 %v1685, %v1689
  %1693 = vrot.lane.b32.xlu0 %v1691, 32
  %v1694 = vpop.permute.xlu0 %1693
  %v1696 = vadd.f32 %v1686, %v1694
  %v1697 = vtanh.pop %v1696
  %1699 = vrot.lane.b32.xlu0 %v1697, 64
  %v1700 = vpop.permute.xlu0 %1699
  %v1702 = vmul.f32 %v1685, %v1700
  %vm1703 = vcmp.eq.s32.totalorder %v218, 8
  %v1704 = vsel %vm1703, %v1702, %v1628
  %v1705 = vld [vmem:[%s9] sm:$0xff]
  %v1706 = vld [vmem:[%s9 + $0x8] sm:$0xff]
  %v1707 = vld [vmem:[%s9 + $0x10] sm:$0xff]
  %v1708 = vld [vmem:[%s9 + $0x18] sm:$0xff]
  %v1709 = vld [vmem:[%s10] sm:$0x1]
  %v1711 = vlaneseq
  %v1712 = vshrl.u32 %v1711, 7
  %v1713 = vsub.s32 0, %v1712
  %v1714 = vrot.slane %v1709, %v1713
  %1717 = vrot.lane.b32.xlu0 %v1704, 32
  %v1718 = vpop.permute.xlu0 %1717
  %v1719 = vsel %vm340, %v1718, 0
  %1721 = vmatprep.subr.mxu0 0.0
  %1722 = vmatpush1.msra.mxu0 %v1705
  %1723 = vmatprep.subr.mxu0 0.0
  %1724 = vmatpush1.msra.mxu0 %v1706
  %1725 = vmatprep.subr.mxu0 0.0
  %1726 = vmatpush1.msra.mxu0 %v1707
  %1727 = vmatprep.subr.mxu0 0.0
  %1728 = vmatpush1.msra.mxu0 %v1708
  %1729 = vmatprep.subr.mxu0 0.0
  %1730 = vmatpush1.msra.mxu0 0.0
  %1731 = vmatprep.subr.mxu0 0.0
  %1732 = vmatpush1.msra.mxu0 0.0
  %1733 = vmatprep.subr.mxu0 0.0
  %1734 = vmatpush1.msra.mxu0 0.0
  %1735 = vmatprep.subr.mxu0 0.0
  %1736 = vmatpush1.msra.mxu0 0.0
  %1737 = vmatprep.subr.mxu0 0.0
  %1738 = vmatpush1.msra.mxu0 0.0
  %1739 = vmatprep.subr.mxu0 0.0
  %1740 = vmatpush1.msra.mxu0 0.0
  %1741 = vmatprep.subr.mxu0 0.0
  %1742 = vmatpush1.msra.mxu0 0.0
  %1743 = vmatprep.subr.mxu0 0.0
  %1744 = vmatpush1.msra.mxu0 0.0
  %1745 = vmatprep.subr.mxu0 0.0
  %1746 = vmatpush1.msra.mxu0 0.0
  %1747 = vmatprep.subr.mxu0 0.0
  %1748 = vmatpush1.msra.mxu0 0.0
  %1749 = vmatprep.subr.mxu0 0.0
  %1750 = vmatpush1.msra.mxu0 0.0
  %1751 = vmatprep.subr.mxu0 0.0
  %1752 = vmatpush1.msra.mxu0 0.0
  %1753 = vmatprep.subr.mxu0 0.0
  %1754 = vmatpush1.msra.mxu0 0.0
  %1755 = vmatprep.subr.mxu0 0.0
  %1756 = vmatpush1.msra.mxu0 0.0
  %1757 = vmatprep.subr.mxu0 0.0
  %1758 = vmatpush1.msra.mxu0 0.0
  %1759 = vmatprep.subr.mxu0 0.0
  %1760 = vmatpush1.msra.mxu0 0.0
  %1761 = vmatprep.subr.mxu0 0.0
  %1762 = vmatpush1.msra.mxu0 0.0
  %1763 = vmatprep.subr.mxu0 0.0
  %1764 = vmatpush1.msra.mxu0 0.0
  %1765 = vmatprep.subr.mxu0 0.0
  %1766 = vmatpush1.msra.mxu0 0.0
  %1767 = vmatprep.subr.mxu0 0.0
  %1768 = vmatpush1.msra.mxu0 0.0
  %1769 = vmatprep.subr.mxu0 0.0
  %1770 = vmatpush1.msra.mxu0 0.0
  %1771 = vmatprep.subr.mxu0 0.0
  %1772 = vmatpush1.msra.mxu0 0.0
  %1773 = vmatprep.subr.mxu0 0.0
  %1774 = vmatpush1.msra.mxu0 0.0
  %1775 = vmatprep.subr.mxu0 0.0
  %1776 = vmatpush1.msra.mxu0 0.0
  %1777 = vmatprep.subr.mxu0 0.0
  %1778 = vmatpush1.msra.mxu0 0.0
  %1779 = vmatprep.subr.mxu0 0.0
  %1780 = vmatpush1.msra.mxu0 0.0
  %1781 = vmatprep.subr.mxu0 0.0
  %1782 = vmatpush1.msra.mxu0 0.0
  %1783 = vmatprep.subr.mxu0 0.0
  %1784 = vmatpush1.msra.mxu0 0.0
  %1785 = vmatprep.mubr.f32.mxu0 0.0
  %1786 = vmatmul.mubr.f32.gmra.mrb[0].mxu0 %v1719
  %v1787 = vpop.f32.mrb[0].mxu0
  %v1788 = vadd.f32 %v1714, %v1787
  %v1789 = vpop.f32.mrb[0].mxu0
  %1790 = vdwg.mxu0
  %vm1791 = vcmask 23552
  %v1792 = vsel %vm1791, %v1788, -inf
  %1793 = vmax.xlane.f32.xlu0 %v1792
  %v1794 = vpop.xlane.xlu0 %1793
  %v1795 = vsub.f32 %v1788, %v1794
  %v1796 = vmul.f32 %v1795, 1.442695
  %v1797 = vpow.pop %v1796
  %v1798 = vsel %vm1791, %v1797, 0.0
  %1799 = vadd.xlane.f32.xlu0 %v1798
  %v1800 = vpop.xlane.xlu0 %1799
  %v1801 = vrcp.pop %v1800
  %v1802 = vmul.f32 %v1797, %v1801
  %1803 = vst.msk [vmem:[%s11] sm:$0xff] %vm1791, %v1802
  // Predicated region
  $region46: #{forward.1} parent=0 // pred_check
    _
  $region47: #{forward.1} parent=0 // pred_check_branch
    %1805 = sbr.rel (0) target = $region49
  $region48: #{forward.1} parent=0 // pred_region
    _
  $region49: #{forward.1} parent=0 // pred_fallthru
    _
  // Predicated region
  $region50: #{forward.1} parent=0 // pred_check
    _
  $region51: #{forward.1} parent=0 // pred_check_branch
    %1807 = sbr.rel (0) target = $region53
  $region52: #{forward.1} parent=0 // pred_region
    _
  $region53: #{forward.1} parent=0 // pred_fallthru
    _

</llo_original>
